<compile_context>
chip_gen: v5e
topology: v5e:2x2
jax: 0.10.0
libtpu: 0.0.40
codegen_flags: <defaults>
</compile_context>

<pallas_src>
import jax
import jax.numpy as jnp
from jax.experimental import pallas as pl
from jax.experimental.pallas import tpu as pltpu


_TARGET_BLOCK_BYTES = 4 * 1024 * 1024   # per-block patch+output bytes target
_VMEM_LIMIT_BYTES = 32 * 1024 * 1024    # safe on v5e/v6e/v7x


def _round_up(x, m):
    return ((x + m - 1) // m) * m


# ----------------------------------------------------------------------------
# Pallas kernels
# ----------------------------------------------------------------------------
def conv_relu_pool_kernel(p_ref, w_ref, b_ref, out_ref):
    """Fused conv(as GEMM) + bias + ReLU + 2x2 max-pool for one row block.

      p_ref   : (4, R, KC)       bf16  im2col patch rows; axis 0 enumerates the
                                       4 positions of each 2x2 pool window.
      w_ref   : (KC, COUT_PAD)   bf16  conv weights as a matrix (lane-padded)
      b_ref   : (1, COUT_PAD)    f32   bias (zero in padded lanes)
      out_ref : (R, COUT_PAD)    bf16  pooled + relu'd conv output rows
    """
    r = out_ref.shape[0]
    kc = p_ref.shape[2]
    # Free leading-dim collapse (pool-position axis outermost, R % 8 == 0):
    # one big MXU GEMM instead of four small ones.
    p = p_ref[...].reshape(4 * r, kc)
    acc = jnp.dot(p, w_ref[...], preferred_element_type=jnp.float32)  # (4R, C)
    # Max over the 4 pool positions (static R-row slabs), then bias + ReLU
    # once (bias is constant over positions and ReLU is monotone).
    m = jnp.maximum(jnp.maximum(acc[0:r], acc[r:2 * r]),
                    jnp.maximum(acc[2 * r:3 * r], acc[3 * r:4 * r]))
    out_ref[...] = jnp.maximum(m + b_ref[...], 0.0).astype(out_ref.dtype)


def linear_kernel(x_ref, w_ref, b_ref, o_ref):
    """fc: y = x @ W^T + b (W passed pre-transposed + lane-padded, bf16)."""
    o_ref[...] = (
        jnp.dot(x_ref[...], w_ref[...], preferred_element_type=jnp.float32)
        + b_ref[...]
    )


# ----------------------------------------------------------------------------
# Wrappers (glue: padding, im2col, tiling decisions)
# ----------------------------------------------------------------------------
def conv_relu_pool(x_nhwc, w_mat, b_pad, c_out):
    """One Conv2d(k=3, s=2, p=1) -> ReLU -> MaxPool2d(2) block.

    x_nhwc : (N, H, W, Cin)      bf16  activation
    w_mat  : (9*Cin, Cout_pad)   bf16  conv weights as a matrix (kh, kw, ci)
    b_pad  : (Cout_pad,)         f32   bias (zero-padded)
    c_out  : int                       true number of output channels
    returns (N, Hp, Wp, Cout)    bf16  pooled activation.
    """
    n, h, w, c_in = x_nhwc.shape
    c_out_pad = w_mat.shape[1]
    k, stride, pad = 3, 2, 1
    ho = (h + 2 * pad - k) // stride + 1
    wo = (w + 2 * pad - k) // stride + 1
    hp, wp = ho // 2, wo // 2          # MaxPool2d(2), floor mode
    he, we = 2 * hp, 2 * wp            # even-cropped conv-output extent
    kc = k * k * c_in
    q = hp * wp
    nq = n * q
    nq_pad = _round_up(nq, 8)

    # im2col in bf16 (halves HBM bytes of the 9x-replicated patches).
    xp = jnp.pad(x_nhwc.astype(jnp.bfloat16),
                 ((0, 0), (pad, pad), (pad, pad), (0, 0)))
    cols = [xp[:, kh:kh + stride * he:stride, kw:kw + stride * we:stride, :]
            for kh in range(k) for kw in range(k)]
    patches = jnp.concatenate(cols, axis=-1)                  # (N, He, We, 9*Cin)

    # Regroup as (pool position, flattened N*Q row, KC): pos = hr*2 + wr,
    # row = (img*hp + hq)*wp + wq.  Fuses into the patch producer.
    pg = (patches.reshape(n, hp, 2, wp, 2, kc)
                 .transpose(2, 4, 0, 1, 3, 5)                 # (hr, wr, n, hq, wq, kc)
                 .reshape(4, nq, kc))
    if nq_pad != nq:
        pg = jnp.pad(pg, ((0, 0), (0, nq_pad - nq), (0, 0)))

    # Row-block size: big enough to amortize per-step fixed cost (~4 MiB of
    # bf16 patches + output per block), capped by the flattened row count,
    # and split into >=2 blocks when possible so both v7x TensorCores work.
    bytes_per_row = 4 * kc * 2 + c_out_pad * 2
    r_cap = max(8, (_TARGET_BLOCK_BYTES // bytes_per_row) // 8 * 8)
    half = _round_up((nq_pad + 1) // 2, 8)
    r = max(8, min(r_cap, half, nq_pad))
    grid = (pl.cdiv(nq_pad, r),)

    flops = 2 * (4 * nq) * kc * c_out_pad
    bytes_accessed = (pg.size * 2 + w_mat.size * 2 + c_out_pad * 4
                      + nq_pad * c_out_pad * 2)

    out = pl.pallas_call(
        conv_relu_pool_kernel,
        out_shape=jax.ShapeDtypeStruct((nq_pad, c_out_pad), jnp.bfloat16),
        grid_spec=pltpu.PrefetchScalarGridSpec(
            num_scalar_prefetch=0,
            grid=grid,
            in_specs=[
                pl.BlockSpec((4, r, kc), lambda i: (0, i, 0)),
                pl.BlockSpec((kc, c_out_pad), lambda i: (0, 0)),
                pl.BlockSpec((1, c_out_pad), lambda i: (0, 0)),
            ],
            out_specs=pl.BlockSpec((r, c_out_pad), lambda i: (i, 0)),
        ),
        compiler_params=pltpu.CompilerParams(
            dimension_semantics=("parallel",),
            vmem_limit_bytes=_VMEM_LIMIT_BYTES),
        cost_estimate=pl.CostEstimate(flops=flops, transcendentals=0,
                                      bytes_accessed=bytes_accessed),
    )(pg, w_mat, b_pad.reshape(1, c_out_pad))

    # Strip row / channel padding (fuses into the next layer's im2col).
    return out[:nq, :c_out].reshape(n, hp, wp, c_out)


def linear(x_bf16, w_t_bf16, b_f32):
    """y = x @ W_pad^T + b_pad; output keeps the padded (lane-dense) columns."""
    n_rows, d = x_bf16.shape
    d_out_pad = w_t_bf16.shape[1]
    tm = n_rows if n_rows <= 512 else 512
    grid = (pl.cdiv(n_rows, tm),)
    flops = 2 * n_rows * d * d_out_pad
    bytes_accessed = (n_rows * d * 2 + d * d_out_pad * 2 + d_out_pad * 4
                      + n_rows * d_out_pad * 4)
    return pl.pallas_call(
        linear_kernel,
        out_shape=jax.ShapeDtypeStruct((n_rows, d_out_pad), jnp.float32),
        grid_spec=pltpu.PrefetchScalarGridSpec(
            num_scalar_prefetch=0,
            grid=grid,
            in_specs=[
                pl.BlockSpec((tm, d), lambda i: (i, 0)),
                pl.BlockSpec((d, d_out_pad), lambda i: (0, 0)),
                pl.BlockSpec((1, d_out_pad), lambda i: (0, 0)),
            ],
            out_specs=pl.BlockSpec((tm, d_out_pad), lambda i: (i, 0)),
        ),
        compiler_params=pltpu.CompilerParams(
            dimension_semantics=("parallel",),
            vmem_limit_bytes=_VMEM_LIMIT_BYTES),
        cost_estimate=pl.CostEstimate(flops=flops, transcendentals=0,
                                      bytes_accessed=bytes_accessed),
    )(x_bf16, w_t_bf16, b_f32.reshape(1, d_out_pad))


def prepare_params(params):
    """One-time weight layout prep: torch layouts -> lane-padded GEMM layouts."""
    convs = []
    for (w, b) in params["convs"]:
        c_out = w.shape[0]
        c_out_pad = _round_up(c_out, 128)
        # (Cout, Cin, kh, kw) -> (kh, kw, Cin, Cout) -> (9*Cin, Cout); matches
        # the (kh, kw, ci) im2col column order.  Pad Cout to 128 lanes.
        w_mat = jnp.transpose(w, (2, 3, 1, 0)).reshape(-1, c_out)
        w_mat = jnp.pad(w_mat, ((0, 0), (0, c_out_pad - c_out))).astype(jnp.bfloat16)
        b_pad = jnp.pad(b.astype(jnp.float32), (0, c_out_pad - c_out))
        convs.append((w_mat, b_pad, c_out))
    wf, bf = params["fc"]
    d_out = wf.shape[0]
    d_out_pad = _round_up(d_out, 128)   # 400 -> 512: unmasked output stores
    wf_t = jnp.pad(wf.T, ((0, 0), (0, d_out_pad - d_out))).astype(jnp.bfloat16)
    bf_pad = jnp.pad(bf.astype(jnp.float32), (0, d_out_pad - d_out))
    return {"convs": convs, "fc": (wf_t, bf_pad, d_out)}


def encoder_forward(prepared, x_nchw):
    """EncoderModel.forward. Input is NCHW (PyTorch convention)."""
    x = jnp.transpose(x_nchw, (0, 2, 3, 1)).astype(jnp.bfloat16)  # -> NHWC bf16
    for (w_mat, b_pad, c_out) in prepared["convs"]:
        x = conv_relu_pool(x, w_mat, b_pad, c_out)
        # TODO(synk): nn.Dropout(0.2) is stochastic; implemented as
        # inference-mode identity here.
    n = x.shape[0]
    x_flat = jnp.transpose(x, (0, 3, 1, 2)).reshape(n, -1)  # NCHW flatten order
    wf_t, bf_pad, d_out = prepared["fc"]
    y = linear(x_flat, wf_t, bf_pad)
    return y[:, :d_out]


# ----------------------------------------------------------------------------
# Deterministic parameter init (shapes from EncoderModel.__init__)
# ----------------------------------------------------------------------------
def init_params(key, in_channels=4, input_size=(48, 48)):
    ks = jax.random.split(key, 8)

    def conv_w(k, cout, cin):
        return jax.random.normal(k, (cout, cin, 3, 3), jnp.float32) * (1.0 / (cin * 9)) ** 0.5

    convs = [
        (conv_w(ks[0], 32, in_channels), 0.01 * jax.random.normal(ks[1], (32,), jnp.float32)),
        (conv_w(ks[2], 64, 32),          0.01 * jax.random.normal(ks[3], (64,), jnp.float32)),
        (conv_w(ks[4], 128, 64),         0.01 * jax.random.normal(ks[5], (128,), jnp.float32)),
    ]
    # _compute_output_dim: three (conv s=2 p=1 k=3 -> pool/2) stages.
    h, w = input_size
    for _ in range(3):
        h = ((h - 1) // 2 + 1) // 2
        w = ((w - 1) // 2 + 1) // 2
    d = 128 * h * w
    fc_w = jax.random.normal(ks[6], (400, d), jnp.float32) * (1.0 / d) ** 0.5
    fc_b = 0.01 * jax.random.normal(ks[7], (400,), jnp.float32)
    return {"convs": convs, "fc": (fc_w, fc_b)}


# ----------------------------------------------------------------------------
# Pure-JAX reference (precision-matched: bf16 MXU inputs, f32 accumulation)
# ----------------------------------------------------------------------------
def reference_forward(params, x_nchw):
    x = x_nchw
    for (w, b) in params["convs"]:
        y = jax.lax.conv_general_dilated(
            x.astype(jnp.bfloat16), w.astype(jnp.bfloat16),
            window_strides=(2, 2), padding=((1, 1), (1, 1)),
            dimension_numbers=("NCHW", "OIHW", "NCHW"),
            preferred_element_type=jnp.float32)
        y = jax.nn.relu(y + b[None, :, None, None])
        x = jax.lax.reduce_window(y, -jnp.inf, jax.lax.max,
                                  (1, 1, 2, 2), (1, 1, 2, 2), "VALID")
    n = x.shape[0]
    xf = x.reshape(n, -1)
    wf, bf = params["fc"]
    return jnp.dot(xf.astype(jnp.bfloat16), wf.T.astype(jnp.bfloat16),
                   preferred_element_type=jnp.float32) + bf


if __name__ == "__main__":
    key = jax.random.PRNGKey(0)
    kx, kp = jax.random.split(key)

    # 48x48 is a small spatial size that survives three stride-2 convs + 2x2
    # pools (final feature map 1x1x128 -> fc input dim 128).
    N, C_IN, H, W = 2, 4, 48, 48
    x = jax.random.normal(kx, (N, C_IN, H, W), jnp.float32)
    params = init_params(kp, in_channels=C_IN, input_size=(H, W))
    prepared = prepare_params(params)

    # Close over prepared params so padded/unpadded dims stay static under jit.
    fwd = jax.jit(lambda xx: encoder_forward(prepared, xx))
    out = fwd(x)
    jax.block_until_ready(out)
    assert out.shape == (N, 400), out.shape

    ref = reference_forward(params, x)
    jax.block_until_ready(ref)
    max_err = float(jnp.max(jnp.abs(out - ref)))
    assert jnp.allclose(out, ref, rtol=2e-3, atol=2e-3), max_err

    print("KERNEL_OK")
</pallas_src>

<mosaic_0001>
module attributes {stable_mosaic.version = 11 : i64} {
  func.func @conv_relu_pool_kernel(%arg0: i32, %arg1: memref<4x144x36xbf16, #tpu.memory_space<vmem>>, %arg2: memref<36x128xbf16, #tpu.memory_space<vmem>>, %arg3: memref<1x128xf32, #tpu.memory_space<vmem>>, %arg4: memref<144x128xbf16, #tpu.memory_space<vmem>>) attributes {dimension_semantics = [#tpu.dimension_semantics<parallel>], iteration_bounds = array<i64: 2>, scalar_prefetch = 0 : i64, scratch_operands = 0 : i64, tpu.core_type = #tpu.core_type<tc>, window_params = [{transform_indices = @transform_0, window_bounds = array<i64: 4, 144, 36>}, {pipeline_mode = #tpu.pipeline_mode<synchronous>, transform_indices = @transform_1, window_bounds = array<i64: 36, 128>}, {pipeline_mode = #tpu.pipeline_mode<synchronous>, transform_indices = @transform_2, window_bounds = array<i64: 1, 128>}, {transform_indices = @transform_3, window_bounds = array<i64: 144, 128>}]} {
    %c0 = arith.constant 0 : index
    %c0_0 = arith.constant 0 : index
    %c0_1 = arith.constant 0 : index
    %0 = vector.load %arg1[%c0, %c0_0, %c0_1] : memref<4x144x36xbf16, #tpu.memory_space<vmem>>, vector<4x144x36xbf16>
    %1 = vector.shape_cast %0 : vector<4x144x36xbf16> to vector<576x36xbf16>
    %c0_2 = arith.constant 0 : index
    %c0_3 = arith.constant 0 : index
    %2 = vector.load %arg2[%c0_2, %c0_3] : memref<36x128xbf16, #tpu.memory_space<vmem>>, vector<36x128xbf16>
    %cst = arith.constant dense<0.000000e+00> : vector<576x128xf32>
    %3 = tpu.matmul %1, %2, %cst {dimension_numbers = #tpu.dot_dimension_numbers<[1], [0], [0], [1], [0, 0, 1, 1], [], []>} : vector<576x36xbf16>, vector<36x128xbf16>, vector<576x128xf32> -> vector<576x128xf32>
    %4 = vector.extract_strided_slice %3 {offsets = [0, 0], sizes = [144, 128], strides = [1, 1]} : vector<576x128xf32> to vector<144x128xf32>
    %5 = vector.extract_strided_slice %3 {offsets = [144, 0], sizes = [144, 128], strides = [1, 1]} : vector<576x128xf32> to vector<144x128xf32>
    %6 = arith.maximumf %4, %5 : vector<144x128xf32>
    %7 = vector.extract_strided_slice %3 {offsets = [288, 0], sizes = [144, 128], strides = [1, 1]} : vector<576x128xf32> to vector<144x128xf32>
    %8 = vector.extract_strided_slice %3 {offsets = [432, 0], sizes = [144, 128], strides = [1, 1]} : vector<576x128xf32> to vector<144x128xf32>
    %9 = arith.maximumf %7, %8 : vector<144x128xf32>
    %10 = arith.maximumf %6, %9 : vector<144x128xf32>
    %c0_4 = arith.constant 0 : index
    %c0_5 = arith.constant 0 : index
    %11 = vector.load %arg3[%c0_4, %c0_5] : memref<1x128xf32, #tpu.memory_space<vmem>>, vector<1x128xf32>
    %12 = vector.broadcast %11 : vector<1x128xf32> to vector<144x128xf32>
    %13 = arith.addf %10, %12 : vector<144x128xf32>
    %cst_6 = arith.constant 0.000000e+00 : f32
    %14 = vector.broadcast %cst_6 : f32 to vector<144x128xf32>
    %15 = arith.maximumf %13, %14 : vector<144x128xf32>
    %16 = arith.truncf %15 : vector<144x128xf32> to vector<144x128xbf16>
    %c0_7 = arith.constant 0 : index
    %c0_8 = arith.constant 0 : index
    %17 = vector.load %arg4[%c0_7, %c0_8] : memref<144x128xbf16, #tpu.memory_space<vmem>>, vector<144x128xbf16>
    tpu.vector_store %arg4[%c0_7, %c0_8], %16 {strides = array<i32>} : memref<144x128xbf16, #tpu.memory_space<vmem>>, vector<144x128xbf16>,
    return
  }
  func.func @transform_0(%arg0: i32) -> (i32, i32, i32) {
    %c0_i32 = arith.constant 0 : i32
    %c0_i32_0 = arith.constant 0 : i32
    %c0_i32_1 = arith.constant 0 : i32
    return %c0_i32, %arg0, %c0_i32_0 : i32, i32, i32
  }
  func.func @transform_1(%arg0: i32) -> (i32, i32) {
    %c0_i32 = arith.constant 0 : i32
    %c0_i32_0 = arith.constant 0 : i32
    %c0_i32_1 = arith.constant 0 : i32
    return %c0_i32, %c0_i32_0 : i32, i32
  }
  func.func @transform_2(%arg0: i32) -> (i32, i32) {
    %c0_i32 = arith.constant 0 : i32
    %c0_i32_0 = arith.constant 0 : i32
    %c0_i32_1 = arith.constant 0 : i32
    return %c0_i32, %c0_i32_0 : i32, i32
  }
  func.func @transform_3(%arg0: i32) -> (i32, i32) {
    %c0_i32 = arith.constant 0 : i32
    %c0_i32_0 = arith.constant 0 : i32
    return %arg0, %c0_i32 : i32, i32
  }
}

module attributes {stable_mosaic.version = 11 : i64} {
  func.func @conv_relu_pool_kernel(%arg0: i32, %arg1: memref<4x16x288xbf16, #tpu.memory_space<vmem>>, %arg2: memref<288x128xbf16, #tpu.memory_space<vmem>>, %arg3: memref<1x128xf32, #tpu.memory_space<vmem>>, %arg4: memref<16x128xbf16, #tpu.memory_space<vmem>>) attributes {dimension_semantics = [#tpu.dimension_semantics<parallel>], iteration_bounds = array<i64: 2>, scalar_prefetch = 0 : i64, scratch_operands = 0 : i64, tpu.core_type = #tpu.core_type<tc>, window_params = [{transform_indices = @transform_0, window_bounds = array<i64: 4, 16, 288>}, {pipeline_mode = #tpu.pipeline_mode<synchronous>, transform_indices = @transform_1, window_bounds = array<i64: 288, 128>}, {pipeline_mode = #tpu.pipeline_mode<synchronous>, transform_indices = @transform_2, window_bounds = array<i64: 1, 128>}, {transform_indices = @transform_3, window_bounds = array<i64: 16, 128>}]} {
    %c0 = arith.constant 0 : index
    %c0_0 = arith.constant 0 : index
    %c0_1 = arith.constant 0 : index
    %0 = vector.load %arg1[%c0, %c0_0, %c0_1] : memref<4x16x288xbf16, #tpu.memory_space<vmem>>, vector<4x16x288xbf16>
    %1 = vector.shape_cast %0 : vector<4x16x288xbf16> to vector<64x288xbf16>
    %c0_2 = arith.constant 0 : index
    %c0_3 = arith.constant 0 : index
    %2 = vector.load %arg2[%c0_2, %c0_3] : memref<288x128xbf16, #tpu.memory_space<vmem>>, vector<288x128xbf16>
    %cst = arith.constant dense<0.000000e+00> : vector<64x128xf32>
    %3 = tpu.matmul %1, %2, %cst {dimension_numbers = #tpu.dot_dimension_numbers<[1], [0], [0], [1], [0, 0, 1, 1], [], []>} : vector<64x288xbf16>, vector<288x128xbf16>, vector<64x128xf32> -> vector<64x128xf32>
    %4 = vector.extract_strided_slice %3 {offsets = [0, 0], sizes = [16, 128], strides = [1, 1]} : vector<64x128xf32> to vector<16x128xf32>
    %5 = vector.extract_strided_slice %3 {offsets = [16, 0], sizes = [16, 128], strides = [1, 1]} : vector<64x128xf32> to vector<16x128xf32>
    %6 = arith.maximumf %4, %5 : vector<16x128xf32>
    %7 = vector.extract_strided_slice %3 {offsets = [32, 0], sizes = [16, 128], strides = [1, 1]} : vector<64x128xf32> to vector<16x128xf32>
    %8 = vector.extract_strided_slice %3 {offsets = [48, 0], sizes = [16, 128], strides = [1, 1]} : vector<64x128xf32> to vector<16x128xf32>
    %9 = arith.maximumf %7, %8 : vector<16x128xf32>
    %10 = arith.maximumf %6, %9 : vector<16x128xf32>
    %c0_4 = arith.constant 0 : index
    %c0_5 = arith.constant 0 : index
    %11 = vector.load %arg3[%c0_4, %c0_5] : memref<1x128xf32, #tpu.memory_space<vmem>>, vector<1x128xf32>
    %12 = vector.broadcast %11 : vector<1x128xf32> to vector<16x128xf32>
    %13 = arith.addf %10, %12 : vector<16x128xf32>
    %cst_6 = arith.constant 0.000000e+00 : f32
    %14 = vector.broadcast %cst_6 : f32 to vector<16x128xf32>
    %15 = arith.maximumf %13, %14 : vector<16x128xf32>
    %16 = arith.truncf %15 : vector<16x128xf32> to vector<16x128xbf16>
    %c0_7 = arith.constant 0 : index
    %c0_8 = arith.constant 0 : index
    %17 = vector.load %arg4[%c0_7, %c0_8] : memref<16x128xbf16, #tpu.memory_space<vmem>>, vector<16x128xbf16>
    tpu.vector_store %arg4[%c0_7, %c0_8], %16 {strides = array<i32>} : memref<16x128xbf16, #tpu.memory_space<vmem>>, vector<16x128xbf16>,
    return
  }
  func.func @transform_0(%arg0: i32) -> (i32, i32, i32) {
    %c0_i32 = arith.constant 0 : i32
    %c0_i32_0 = arith.constant 0 : i32
    %c0_i32_1 = arith.constant 0 : i32
    return %c0_i32, %arg0, %c0_i32_0 : i32, i32, i32
  }
  func.func @transform_1(%arg0: i32) -> (i32, i32) {
    %c0_i32 = arith.constant 0 : i32
    %c0_i32_0 = arith.constant 0 : i32
    %c0_i32_1 = arith.constant 0 : i32
    return %c0_i32, %c0_i32_0 : i32, i32
  }
  func.func @transform_2(%arg0: i32) -> (i32, i32) {
    %c0_i32 = arith.constant 0 : i32
    %c0_i32_0 = arith.constant 0 : i32
    %c0_i32_1 = arith.constant 0 : i32
    return %c0_i32, %c0_i32_0 : i32, i32
  }
  func.func @transform_3(%arg0: i32) -> (i32, i32) {
    %c0_i32 = arith.constant 0 : i32
    %c0_i32_0 = arith.constant 0 : i32
    return %arg0, %c0_i32 : i32, i32
  }
}

module attributes {stable_mosaic.version = 11 : i64} {
  func.func @conv_relu_pool_kernel(%arg0: i32, %arg1: memref<4x8x576xbf16, #tpu.memory_space<vmem>>, %arg2: memref<576x128xbf16, #tpu.memory_space<vmem>>, %arg3: memref<1x128xf32, #tpu.memory_space<vmem>>, %arg4: memref<8x128xbf16, #tpu.memory_space<vmem>>) attributes {dimension_semantics = [#tpu.dimension_semantics<parallel>], iteration_bounds = array<i64: 1>, scalar_prefetch = 0 : i64, scratch_operands = 0 : i64, tpu.core_type = #tpu.core_type<tc>, window_params = [{transform_indices = @transform_0, window_bounds = array<i64: 4, 8, 576>}, {pipeline_mode = #tpu.pipeline_mode<synchronous>, transform_indices = @transform_1, window_bounds = array<i64: 576, 128>}, {pipeline_mode = #tpu.pipeline_mode<synchronous>, transform_indices = @transform_2, window_bounds = array<i64: 1, 128>}, {transform_indices = @transform_3, window_bounds = array<i64: 8, 128>}]} {
    %c0 = arith.constant 0 : index
    %c0_0 = arith.constant 0 : index
    %c0_1 = arith.constant 0 : index
    %0 = vector.load %arg1[%c0, %c0_0, %c0_1] : memref<4x8x576xbf16, #tpu.memory_space<vmem>>, vector<4x8x576xbf16>
    %1 = vector.shape_cast %0 : vector<4x8x576xbf16> to vector<32x576xbf16>
    %c0_2 = arith.constant 0 : index
    %c0_3 = arith.constant 0 : index
    %2 = vector.load %arg2[%c0_2, %c0_3] : memref<576x128xbf16, #tpu.memory_space<vmem>>, vector<576x128xbf16>
    %cst = arith.constant dense<0.000000e+00> : vector<32x128xf32>
    %3 = tpu.matmul %1, %2, %cst {dimension_numbers = #tpu.dot_dimension_numbers<[1], [0], [0], [1], [0, 0, 1, 1], [], []>} : vector<32x576xbf16>, vector<576x128xbf16>, vector<32x128xf32> -> vector<32x128xf32>
    %4 = vector.extract_strided_slice %3 {offsets = [0, 0], sizes = [8, 128], strides = [1, 1]} : vector<32x128xf32> to vector<8x128xf32>
    %5 = vector.extract_strided_slice %3 {offsets = [8, 0], sizes = [8, 128], strides = [1, 1]} : vector<32x128xf32> to vector<8x128xf32>
    %6 = arith.maximumf %4, %5 : vector<8x128xf32>
    %7 = vector.extract_strided_slice %3 {offsets = [16, 0], sizes = [8, 128], strides = [1, 1]} : vector<32x128xf32> to vector<8x128xf32>
    %8 = vector.extract_strided_slice %3 {offsets = [24, 0], sizes = [8, 128], strides = [1, 1]} : vector<32x128xf32> to vector<8x128xf32>
    %9 = arith.maximumf %7, %8 : vector<8x128xf32>
    %10 = arith.maximumf %6, %9 : vector<8x128xf32>
    %c0_4 = arith.constant 0 : index
    %c0_5 = arith.constant 0 : index
    %11 = vector.load %arg3[%c0_4, %c0_5] : memref<1x128xf32, #tpu.memory_space<vmem>>, vector<1x128xf32>
    %12 = vector.broadcast %11 : vector<1x128xf32> to vector<8x128xf32>
    %13 = arith.addf %10, %12 : vector<8x128xf32>
    %cst_6 = arith.constant 0.000000e+00 : f32
    %14 = vector.broadcast %cst_6 : f32 to vector<8x128xf32>
    %15 = arith.maximumf %13, %14 : vector<8x128xf32>
    %16 = arith.truncf %15 : vector<8x128xf32> to vector<8x128xbf16>
    %c0_7 = arith.constant 0 : index
    %c0_8 = arith.constant 0 : index
    %17 = vector.load %arg4[%c0_7, %c0_8] : memref<8x128xbf16, #tpu.memory_space<vmem>>, vector<8x128xbf16>
    tpu.vector_store %arg4[%c0_7, %c0_8], %16 {strides = array<i32>} : memref<8x128xbf16, #tpu.memory_space<vmem>>, vector<8x128xbf16>,
    return
  }
  func.func @transform_0(%arg0: i32) -> (i32, i32, i32) {
    %c0_i32 = arith.constant 0 : i32
    %c0_i32_0 = arith.constant 0 : i32
    %c0_i32_1 = arith.constant 0 : i32
    return %c0_i32, %arg0, %c0_i32_0 : i32, i32, i32
  }
  func.func @transform_1(%arg0: i32) -> (i32, i32) {
    %c0_i32 = arith.constant 0 : i32
    %c0_i32_0 = arith.constant 0 : i32
    %c0_i32_1 = arith.constant 0 : i32
    return %c0_i32, %c0_i32_0 : i32, i32
  }
  func.func @transform_2(%arg0: i32) -> (i32, i32) {
    %c0_i32 = arith.constant 0 : i32
    %c0_i32_0 = arith.constant 0 : i32
    %c0_i32_1 = arith.constant 0 : i32
    return %c0_i32, %c0_i32_0 : i32, i32
  }
  func.func @transform_3(%arg0: i32) -> (i32, i32) {
    %c0_i32 = arith.constant 0 : i32
    %c0_i32_0 = arith.constant 0 : i32
    return %arg0, %c0_i32 : i32, i32
  }
}

module attributes {stable_mosaic.version = 11 : i64} {
  func.func @linear_kernel(%arg0: i32, %arg1: memref<2x128xbf16, #tpu.memory_space<vmem>>, %arg2: memref<128x512xbf16, #tpu.memory_space<vmem>>, %arg3: memref<1x512xf32, #tpu.memory_space<vmem>>, %arg4: memref<2x512xf32, #tpu.memory_space<vmem>>) attributes {dimension_semantics = [#tpu.dimension_semantics<parallel>], iteration_bounds = array<i64: 1>, scalar_prefetch = 0 : i64, scratch_operands = 0 : i64, tpu.core_type = #tpu.core_type<tc>, window_params = [{transform_indices = @transform_0, window_bounds = array<i64: 2, 128>}, {pipeline_mode = #tpu.pipeline_mode<synchronous>, transform_indices = @transform_1, window_bounds = array<i64: 128, 512>}, {pipeline_mode = #tpu.pipeline_mode<synchronous>, transform_indices = @transform_2, window_bounds = array<i64: 1, 512>}, {transform_indices = @transform_3, window_bounds = array<i64: 2, 512>}]} {
    %c0 = arith.constant 0 : index
    %c0_0 = arith.constant 0 : index
    %0 = vector.load %arg1[%c0, %c0_0] : memref<2x128xbf16, #tpu.memory_space<vmem>>, vector<2x128xbf16>
    %c0_1 = arith.constant 0 : index
    %c0_2 = arith.constant 0 : index
    %1 = vector.load %arg2[%c0_1, %c0_2] : memref<128x512xbf16, #tpu.memory_space<vmem>>, vector<128x512xbf16>
    %cst = arith.constant dense<0.000000e+00> : vector<2x512xf32>
    %2 = tpu.matmul %0, %1, %cst {dimension_numbers = #tpu.dot_dimension_numbers<[1], [0], [0], [1], [0, 0, 1, 1], [], []>} : vector<2x128xbf16>, vector<128x512xbf16>, vector<2x512xf32> -> vector<2x512xf32>
    %c0_3 = arith.constant 0 : index
    %c0_4 = arith.constant 0 : index
    %3 = vector.load %arg3[%c0_3, %c0_4] : memref<1x512xf32, #tpu.memory_space<vmem>>, vector<1x512xf32>
    %4 = vector.broadcast %3 : vector<1x512xf32> to vector<2x512xf32>
    %5 = arith.addf %2, %4 : vector<2x512xf32>
    %c0_5 = arith.constant 0 : index
    %c0_6 = arith.constant 0 : index
    %6 = vector.load %arg4[%c0_5, %c0_6] : memref<2x512xf32, #tpu.memory_space<vmem>>, vector<2x512xf32>
    tpu.vector_store %arg4[%c0_5, %c0_6], %5 {strides = array<i32>} : memref<2x512xf32, #tpu.memory_space<vmem>>, vector<2x512xf32>,
    return
  }
  func.func @transform_0(%arg0: i32) -> (i32, i32) {
    %c0_i32 = arith.constant 0 : i32
    %c0_i32_0 = arith.constant 0 : i32
    return %arg0, %c0_i32 : i32, i32
  }
  func.func @transform_1(%arg0: i32) -> (i32, i32) {
    %c0_i32 = arith.constant 0 : i32
    %c0_i32_0 = arith.constant 0 : i32
    %c0_i32_1 = arith.constant 0 : i32
    return %c0_i32, %c0_i32_0 : i32, i32
  }
  func.func @transform_2(%arg0: i32) -> (i32, i32) {
    %c0_i32 = arith.constant 0 : i32
    %c0_i32_0 = arith.constant 0 : i32
    %c0_i32_1 = arith.constant 0 : i32
    return %c0_i32, %c0_i32_0 : i32, i32
  }
  func.func @transform_3(%arg0: i32) -> (i32, i32) {
    %c0_i32 = arith.constant 0 : i32
    %c0_i32_0 = arith.constant 0 : i32
    return %arg0, %c0_i32 : i32, i32
  }
}

</mosaic_0001>

<llo_original>
// kernel: _lambda_.4
$region0: #{_lambda_.4}
  #allocation0 [shape = 'u32[]', space=smem, size = 0x4, offset = 0x4, fixed_abs, tag = 'smem constant byte address 0x4 - core index']
  #allocation1 [shape = 'u32[72,128]{1,0:T(1,128)}', space=vmem, size = 0x9000, scoped, tag = 'internal scratch']
  %s0 = inlined_call_operand.vmem [shape: bf16[4,288,36], index: 0, kind: input, shape index: {}]
  %s1 = inlined_call_operand.vmem [shape: bf16[36,128], index: 1, kind: input, shape index: {}]
  %s2 = inlined_call_operand.vmem [shape: f32[1,128], index: 2, kind: input, shape index: {}]
  %s3 = inlined_call_operand.vmem [shape: bf16[288,128], index: 3, kind: output, shape index: {}]
  %s4 = sld [smem:[#allocation0]]
  $region86: #{_lambda_.4} parent=0
    _
  %s6 = ssub.s32 1, %s4
  %s7 = scalar_select 0, %s6, %s4
  $region1: #{_lambda_.4} parent=0
    #allocation2 [shape = 'u8[294912]{0}', space=vmem, size = 0x48000, scoped, tag = 'input window, operand 0']
    loop: start=0, step=1, limit=4
    $region2: #{_lambda_.4} parent=1 // loop_pre_header
      _
    $region3: #{_lambda_.4} parent=1 // loop_header
      %s9 = sphi 0, %s13
      %p10 = scmp.ge.s32.totalorder %s9, 4
      %s19 = sphi 0, %s21
      %s22 = sphi 0, %s19
      %s23 = sphi 0, %s22
      %s39 = sphi 0, %s23
      %s43 = sphi 0, %s43
      %s45 = sphi 0, %s43
      %s46 = sphi 0, %s45
      %s60 = sphi 0, %s46
      %s64 = sphi 0, %s64
      %s66 = sphi 0, %s64
      %s67 = sphi 0, %s66
      %s81 = sphi 0, %s67
      %s87 = sphi 0, %s89
      %s90 = sphi 0, %s87
      %s91 = sphi 0, %s90
      %s107 = sphi 0, %s91
    $region4: #{_lambda_.4} parent=1 // loop_header_branch
      %12 = sbr.rel (%p10) target = $region8
    $region5: #{_lambda_.4} parent=1 // loop_body
      %s14 = ssub.s32 %s9, 1
      %s15 = ssub.s32 %s9, 2
      %s16 = sadd.s32 %s9, 1
      %s17 = ssub.s32 %s9, %s16
      %p18 = scmp.eq.s32.totalorder %s17, 0
      %s20 = sadd.s32 %s19, 1
      %s21 = scalar_select %p18, %s19, %s20
      %p24 = pneg %p18
      %p25 = scmp.eq.s32.totalorder %s9, 1
      %p26 = por %p24, %p25
      %p27 = scmp.ne.s32.totalorder %s19, %s22
      %p28 = scmp.eq.s32.totalorder %s9, 0
      %p29 = por %p27, %p28
      %p30 = scmp.ne.s32.totalorder %s19, %s22
      %p31 = scmp.eq.s32.totalorder %s14, 1
      %p32 = por %p30, %p31
      %p33 = scmp.ne.s32.totalorder %s22, %s23
      %p34 = scmp.eq.s32.totalorder %s14, 0
      %p35 = por %p33, %p34
      %p36 = scmp.ne.s32.totalorder %s22, %s23
      %p37 = scmp.eq.s32.totalorder %s15, 1
      %p38 = por %p36, %p37
      %p40 = scmp.ne.s32.totalorder %s23, %s39
      %p41 = scmp.eq.s32.totalorder %s15, 0
      %p42 = por %p40, %p41
      %s44 = sadd.s32 %s43, 1
      %p47 = scmp.eq.s32.totalorder %s9, 1
      %p48 = scmp.ne.s32.totalorder %s43, %s45
      %p49 = scmp.eq.s32.totalorder %s9, 0
      %p50 = por %p48, %p49
      %p51 = scmp.ne.s32.totalorder %s43, %s45
      %p52 = scmp.eq.s32.totalorder %s14, 1
      %p53 = por %p51, %p52
      %p54 = scmp.ne.s32.totalorder %s45, %s46
      %p55 = scmp.eq.s32.totalorder %s14, 0
      %p56 = por %p54, %p55
      %p57 = scmp.ne.s32.totalorder %s45, %s46
      %p58 = scmp.eq.s32.totalorder %s15, 1
      %p59 = por %p57, %p58
      %p61 = scmp.ne.s32.totalorder %s46, %s60
      %p62 = scmp.eq.s32.totalorder %s15, 0
      %p63 = por %p61, %p62
      %s65 = sadd.s32 %s64, 1
      %p68 = scmp.eq.s32.totalorder %s9, 1
      %p69 = scmp.ne.s32.totalorder %s64, %s66
      %p70 = scmp.eq.s32.totalorder %s9, 0
      %p71 = por %p69, %p70
      %p72 = scmp.ne.s32.totalorder %s64, %s66
      %p73 = scmp.eq.s32.totalorder %s14, 1
      %p74 = por %p72, %p73
      %p75 = scmp.ne.s32.totalorder %s66, %s67
      %p76 = scmp.eq.s32.totalorder %s14, 0
      %p77 = por %p75, %p76
      %p78 = scmp.ne.s32.totalorder %s66, %s67
      %p79 = scmp.eq.s32.totalorder %s15, 1
      %p80 = por %p78, %p79
      %p82 = scmp.ne.s32.totalorder %s67, %s81
      %p83 = scmp.eq.s32.totalorder %s15, 0
      %p84 = por %p82, %p83
      %s85 = ssub.s32 %s9, %s16
      %p86 = scmp.eq.s32.totalorder %s85, 0
      %s88 = sadd.s32 %s87, 1
      %s89 = scalar_select %p86, %s87, %s88
      %p92 = pneg %p86
      %p93 = scmp.eq.s32.totalorder %s9, 1
      %p94 = por %p92, %p93
      %p95 = scmp.ne.s32.totalorder %s87, %s90
      %p96 = scmp.eq.s32.totalorder %s9, 0
      %p97 = por %p95, %p96
      %p98 = scmp.ne.s32.totalorder %s87, %s90
      %p99 = scmp.eq.s32.totalorder %s14, 1
      %p100 = por %p98, %p99
      %p101 = scmp.ne.s32.totalorder %s90, %s91
      %p102 = scmp.eq.s32.totalorder %s14, 0
      %p103 = por %p101, %p102
      %p104 = scmp.ne.s32.totalorder %s90, %s91
      %p105 = scmp.eq.s32.totalorder %s15, 1
      %p106 = por %p104, %p105
      %p108 = scmp.ne.s32.totalorder %s91, %s107
      %p109 = scmp.eq.s32.totalorder %s15, 0
      %p110 = por %p108, %p109
      %p111 = scmp.le.s32.totalorder 1, %s9
      %p112 = scmp.lt.s32.totalorder %s9, 3
      %p113 = pnand %p111, %p112
      %p114 = pneg %p113
      // Predicated region
      $region9: #{_lambda_.4} parent=5 // pred_check
        _
      $region10: #{_lambda_.4} parent=5 // pred_check_branch
        %116 = sbr.rel (%p113) target = $region12
      $region11: #{_lambda_.4} parent=5 // pred_region
        %s117 = ssub.s32 %s9, 1
        // Predicated region
        $region13: #{_lambda_.4} parent=11 // pred_check
          %p118 = pneg %p56
        $region14: #{_lambda_.4} parent=11 // pred_check_branch
          %120 = sbr.rel (%p118) target = $region16
        $region15: #{_lambda_.4} parent=11 // pred_region
          _
        $region16: #{_lambda_.4} parent=11 // pred_fallthru
          _
        // Predicated region
        $region17: #{_lambda_.4} parent=11 // pred_check
          %p121 = pneg %p77
        $region18: #{_lambda_.4} parent=11 // pred_check_branch
          %123 = sbr.rel (%p121) target = $region20
        $region19: #{_lambda_.4} parent=11 // pred_region
          _
        $region20: #{_lambda_.4} parent=11 // pred_fallthru
          _
      $region12: #{_lambda_.4} parent=5 // pred_fallthru
        _
      %p124 = scmp.lt.s32.totalorder %s9, 2
      // Predicated region
      $region21: #{_lambda_.4} parent=5 // pred_check
        %p125 = pneg %p124
      $region22: #{_lambda_.4} parent=5 // pred_check_branch
        %127 = sbr.rel (%p125) target = $region24
      $region23: #{_lambda_.4} parent=5 // pred_region
        // Predicated region
        $region25: #{_lambda_.4} parent=23 // pred_check
          %p128 = pneg %p29
        $region26: #{_lambda_.4} parent=23 // pred_check_branch
          %130 = sbr.rel (%p128) target = $region28
        $region27: #{_lambda_.4} parent=23 // pred_region
          %s131 = sand.u32 %s19, 1
          %s132 = sand.u32 %s19, 1
          %s133 = smul.addr %s132, 288
          %s134 = scalar_lea.vmem [#allocation2], %s133
          %s135 = smul.u32 18, %s9
          %s136 = smul.addr %s135, 4
          %s137 = scalar_lea.vmem %s0, %s136
          // Predicated region
          $region29: #{_lambda_.4} parent=27 // pred_check
            _
          $region30: #{_lambda_.4} parent=27 // pred_check_branch
            %139 = sbr.rel (0) target = $region32
          $region31: #{_lambda_.4} parent=27 // pred_region
            // Predicated region
            $region33: #{_lambda_.4} parent=31 // pred_check
              _
            $region34: #{_lambda_.4} parent=31 // pred_check_branch
              %141 = sbr.rel target = $region36
            $region35: #{_lambda_.4} parent=31 // pred_region
              // Predicated region
              $region48: #{_lambda_.4} parent=35 // pred_check
                _
              $region49: #{_lambda_.4} parent=35 // pred_check_branch
                %299 = sbr.rel (0) target = $region51
              $region50: #{_lambda_.4} parent=35 // pred_region
                loop: start=0, step=1, limit=1
                $region52: #{_lambda_.4} parent=50 // loop_pre_header
                  _
                $region53: #{_lambda_.4} parent=50 // loop_header
                  %s301 = sphi 0, %s305
                  %p302 = scmp.ge.s32.totalorder %s301, 1
                  %s306 = sphi %s137, %s137
                  %s307 = sphi %s134, %s134
                $region54: #{_lambda_.4} parent=50 // loop_header_branch
                  %304 = sbr.rel (%p302) target = $region58
                $region55: #{_lambda_.4} parent=50 // loop_body
                  _
                $region56: #{_lambda_.4} parent=50 // loop_footer
                  %s305 = sadd.s32 1, %s301
                $region57: #{_lambda_.4} parent=50 // loop_footer_branch
                  %300 = sbr.rel target = $region53
                $region58: #{_lambda_.4} parent=50 // loop_exit
                  _
                %s309 = ssub.s32 16, 1
                loop: start=0, step=1, limit=1
                $region59: #{_lambda_.4} parent=50 // loop_pre_header
                  _
                $region60: #{_lambda_.4} parent=50 // loop_header
                  %s311 = sphi 0, %s315
                  %p312 = scmp.ge.s32.totalorder %s311, 1
                  %s316 = sphi %s137, %s137
                  %s317 = sphi %s134, %s134
                $region61: #{_lambda_.4} parent=50 // loop_header_branch
                  %314 = sbr.rel (%p312) target = $region65
                $region62: #{_lambda_.4} parent=50 // loop_body
                  %v318 = vld [vmem:[%s316] sm:%s309]
                  %319 = vst [vmem:[%s317] sm:%s309] %v318
                  %v320 = vld [vmem:[%s316 + $0x4] sm:%s309]
                  %321 = vst [vmem:[%s317 + $0x4] sm:%s309] %v320
                  %v322 = vld [vmem:[%s316 + $0x8] sm:%s309]
                  %323 = vst [vmem:[%s317 + $0x8] sm:%s309] %v322
                  %v324 = vld [vmem:[%s316 + $0xc] sm:%s309]
                  %325 = vst [vmem:[%s317 + $0xc] sm:%s309] %v324
                  %v326 = vld [vmem:[%s316 + $0x10] sm:%s309]
                  %327 = vst [vmem:[%s317 + $0x10] sm:%s309] %v326
                  %v328 = vld [vmem:[%s316 + $0x14] sm:%s309]
                  %329 = vst [vmem:[%s317 + $0x14] sm:%s309] %v328
                  %v330 = vld [vmem:[%s316 + $0x18] sm:%s309]
                  %331 = vst [vmem:[%s317 + $0x18] sm:%s309] %v330
                  %v332 = vld [vmem:[%s316 + $0x1c] sm:%s309]
                  %333 = vst [vmem:[%s317 + $0x1c] sm:%s309] %v332
                  %v334 = vld [vmem:[%s316 + $0x20] sm:%s309]
                  %335 = vst [vmem:[%s317 + $0x20] sm:%s309] %v334
                  %v336 = vld [vmem:[%s316 + $0x24] sm:%s309]
                  %337 = vst [vmem:[%s317 + $0x24] sm:%s309] %v336
                  %v338 = vld [vmem:[%s316 + $0x28] sm:%s309]
                  %339 = vst [vmem:[%s317 + $0x28] sm:%s309] %v338
                  %v340 = vld [vmem:[%s316 + $0x2c] sm:%s309]
                  %341 = vst [vmem:[%s317 + $0x2c] sm:%s309] %v340
                  %v342 = vld [vmem:[%s316 + $0x30] sm:%s309]
                  %343 = vst [vmem:[%s317 + $0x30] sm:%s309] %v342
                  %v344 = vld [vmem:[%s316 + $0x34] sm:%s309]
                  %345 = vst [vmem:[%s317 + $0x34] sm:%s309] %v344
                  %v346 = vld [vmem:[%s316 + $0x38] sm:%s309]
                  %347 = vst [vmem:[%s317 + $0x38] sm:%s309] %v346
                  %v348 = vld [vmem:[%s316 + $0x3c] sm:%s309]
                  %349 = vst [vmem:[%s317 + $0x3c] sm:%s309] %v348
                  %v350 = vld [vmem:[%s316 + $0x40] sm:%s309]
                  %351 = vst [vmem:[%s317 + $0x40] sm:%s309] %v350
                  %v352 = vld [vmem:[%s316 + $0x44] sm:%s309]
                  %353 = vst [vmem:[%s317 + $0x44] sm:%s309] %v352
                  %v354 = vld [vmem:[%s316 + $0x90] sm:%s309]
                  %355 = vst [vmem:[%s317 + $0x48] sm:%s309] %v354
                  %v356 = vld [vmem:[%s316 + $0x94] sm:%s309]
                  %357 = vst [vmem:[%s317 + $0x4c] sm:%s309] %v356
                  %v358 = vld [vmem:[%s316 + $0x98] sm:%s309]
                  %359 = vst [vmem:[%s317 + $0x50] sm:%s309] %v358
                  %v360 = vld [vmem:[%s316 + $0x9c] sm:%s309]
                  %361 = vst [vmem:[%s317 + $0x54] sm:%s309] %v360
                  %v362 = vld [vmem:[%s316 + $0xa0] sm:%s309]
                  %363 = vst [vmem:[%s317 + $0x58] sm:%s309] %v362
                  %v364 = vld [vmem:[%s316 + $0xa4] sm:%s309]
                  %365 = vst [vmem:[%s317 + $0x5c] sm:%s309] %v364
                  %v366 = vld [vmem:[%s316 + $0xa8] sm:%s309]
                  %367 = vst [vmem:[%s317 + $0x60] sm:%s309] %v366
                  %v368 = vld [vmem:[%s316 + $0xac] sm:%s309]
                  %369 = vst [vmem:[%s317 + $0x64] sm:%s309] %v368
                  %v370 = vld [vmem:[%s316 + $0xb0] sm:%s309]
                  %371 = vst [vmem:[%s317 + $0x68] sm:%s309] %v370
                  %v372 = vld [vmem:[%s316 + $0xb4] sm:%s309]
                  %373 = vst [vmem:[%s317 + $0x6c] sm:%s309] %v372
                  %v374 = vld [vmem:[%s316 + $0xb8] sm:%s309]
                  %375 = vst [vmem:[%s317 + $0x70] sm:%s309] %v374
                  %v376 = vld [vmem:[%s316 + $0xbc] sm:%s309]
                  %377 = vst [vmem:[%s317 + $0x74] sm:%s309] %v376
                  %v378 = vld [vmem:[%s316 + $0xc0] sm:%s309]
                  %379 = vst [vmem:[%s317 + $0x78] sm:%s309] %v378
                  %v380 = vld [vmem:[%s316 + $0xc4] sm:%s309]
                  %381 = vst [vmem:[%s317 + $0x7c] sm:%s309] %v380
                  %v382 = vld [vmem:[%s316 + $0xc8] sm:%s309]
                  %383 = vst [vmem:[%s317 + $0x80] sm:%s309] %v382
                  %v384 = vld [vmem:[%s316 + $0xcc] sm:%s309]
                  %385 = vst [vmem:[%s317 + $0x84] sm:%s309] %v384
                  %v386 = vld [vmem:[%s316 + $0xd0] sm:%s309]
                  %387 = vst [vmem:[%s317 + $0x88] sm:%s309] %v386
                  %v388 = vld [vmem:[%s316 + $0xd4] sm:%s309]
                  %389 = vst [vmem:[%s317 + $0x8c] sm:%s309] %v388
                  %v390 = vld [vmem:[%s316 + $0x120] sm:%s309]
                  %391 = vst [vmem:[%s317 + $0x90] sm:%s309] %v390
                  %v392 = vld [vmem:[%s316 + $0x124] sm:%s309]
                  %393 = vst [vmem:[%s317 + $0x94] sm:%s309] %v392
                  %v394 = vld [vmem:[%s316 + $0x128] sm:%s309]
                  %395 = vst [vmem:[%s317 + $0x98] sm:%s309] %v394
                  %v396 = vld [vmem:[%s316 + $0x12c] sm:%s309]
                  %397 = vst [vmem:[%s317 + $0x9c] sm:%s309] %v396
                  %v398 = vld [vmem:[%s316 + $0x130] sm:%s309]
                  %399 = vst [vmem:[%s317 + $0xa0] sm:%s309] %v398
                  %v400 = vld [vmem:[%s316 + $0x134] sm:%s309]
                  %401 = vst [vmem:[%s317 + $0xa4] sm:%s309] %v400
                  %v402 = vld [vmem:[%s316 + $0x138] sm:%s309]
                  %403 = vst [vmem:[%s317 + $0xa8] sm:%s309] %v402
                  %v404 = vld [vmem:[%s316 + $0x13c] sm:%s309]
                  %405 = vst [vmem:[%s317 + $0xac] sm:%s309] %v404
                  %v406 = vld [vmem:[%s316 + $0x140] sm:%s309]
                  %407 = vst [vmem:[%s317 + $0xb0] sm:%s309] %v406
                  %v408 = vld [vmem:[%s316 + $0x144] sm:%s309]
                  %409 = vst [vmem:[%s317 + $0xb4] sm:%s309] %v408
                  %v410 = vld [vmem:[%s316 + $0x148] sm:%s309]
                  %411 = vst [vmem:[%s317 + $0xb8] sm:%s309] %v410
                  %v412 = vld [vmem:[%s316 + $0x14c] sm:%s309]
                  %413 = vst [vmem:[%s317 + $0xbc] sm:%s309] %v412
                  %v414 = vld [vmem:[%s316 + $0x150] sm:%s309]
                  %415 = vst [vmem:[%s317 + $0xc0] sm:%s309] %v414
                  %v416 = vld [vmem:[%s316 + $0x154] sm:%s309]
                  %417 = vst [vmem:[%s317 + $0xc4] sm:%s309] %v416
                  %v418 = vld [vmem:[%s316 + $0x158] sm:%s309]
                  %419 = vst [vmem:[%s317 + $0xc8] sm:%s309] %v418
                  %v420 = vld [vmem:[%s316 + $0x15c] sm:%s309]
                  %421 = vst [vmem:[%s317 + $0xcc] sm:%s309] %v420
                  %v422 = vld [vmem:[%s316 + $0x160] sm:%s309]
                  %423 = vst [vmem:[%s317 + $0xd0] sm:%s309] %v422
                  %v424 = vld [vmem:[%s316 + $0x164] sm:%s309]
                  %425 = vst [vmem:[%s317 + $0xd4] sm:%s309] %v424
                  %v426 = vld [vmem:[%s316 + $0x1b0] sm:%s309]
                  %427 = vst [vmem:[%s317 + $0xd8] sm:%s309] %v426
                  %v428 = vld [vmem:[%s316 + $0x1b4] sm:%s309]
                  %429 = vst [vmem:[%s317 + $0xdc] sm:%s309] %v428
                  %v430 = vld [vmem:[%s316 + $0x1b8] sm:%s309]
                  %431 = vst [vmem:[%s317 + $0xe0] sm:%s309] %v430
                  %v432 = vld [vmem:[%s316 + $0x1bc] sm:%s309]
                  %433 = vst [vmem:[%s317 + $0xe4] sm:%s309] %v432
                  %v434 = vld [vmem:[%s316 + $0x1c0] sm:%s309]
                  %435 = vst [vmem:[%s317 + $0xe8] sm:%s309] %v434
                  %v436 = vld [vmem:[%s316 + $0x1c4] sm:%s309]
                  %437 = vst [vmem:[%s317 + $0xec] sm:%s309] %v436
                  %v438 = vld [vmem:[%s316 + $0x1c8] sm:%s309]
                  %439 = vst [vmem:[%s317 + $0xf0] sm:%s309] %v438
                  %v440 = vld [vmem:[%s316 + $0x1cc] sm:%s309]
                  %441 = vst [vmem:[%s317 + $0xf4] sm:%s309] %v440
                  %v442 = vld [vmem:[%s316 + $0x1d0] sm:%s309]
                  %443 = vst [vmem:[%s317 + $0xf8] sm:%s309] %v442
                  %v444 = vld [vmem:[%s316 + $0x1d4] sm:%s309]
                  %445 = vst [vmem:[%s317 + $0xfc] sm:%s309] %v444
                  %v446 = vld [vmem:[%s316 + $0x1d8] sm:%s309]
                  %447 = vst [vmem:[%s317 + $0x100] sm:%s309] %v446
                  %v448 = vld [vmem:[%s316 + $0x1dc] sm:%s309]
                  %449 = vst [vmem:[%s317 + $0x104] sm:%s309] %v448
                  %v450 = vld [vmem:[%s316 + $0x1e0] sm:%s309]
                  %451 = vst [vmem:[%s317 + $0x108] sm:%s309] %v450
                  %v452 = vld [vmem:[%s316 + $0x1e4] sm:%s309]
                  %453 = vst [vmem:[%s317 + $0x10c] sm:%s309] %v452
                  %v454 = vld [vmem:[%s316 + $0x1e8] sm:%s309]
                  %455 = vst [vmem:[%s317 + $0x110] sm:%s309] %v454
                  %v456 = vld [vmem:[%s316 + $0x1ec] sm:%s309]
                  %457 = vst [vmem:[%s317 + $0x114] sm:%s309] %v456
                  %v458 = vld [vmem:[%s316 + $0x1f0] sm:%s309]
                  %459 = vst [vmem:[%s317 + $0x118] sm:%s309] %v458
                  %v460 = vld [vmem:[%s316 + $0x1f4] sm:%s309]
                  %461 = vst [vmem:[%s317 + $0x11c] sm:%s309] %v460
                $region63: #{_lambda_.4} parent=50 // loop_footer
                  %s315 = sadd.s32 1, %s311
                $region64: #{_lambda_.4} parent=50 // loop_footer_branch
                  %310 = sbr.rel target = $region60
                $region65: #{_lambda_.4} parent=50 // loop_exit
                  _
              $region51: #{_lambda_.4} parent=35 // pred_fallthru
                _
            $region36: #{_lambda_.4} parent=31 // pred_fallthru
              _
            // Predicated region
            $region37: #{_lambda_.4} parent=31 // pred_check
              _
            $region38: #{_lambda_.4} parent=31 // pred_check_branch
              %143 = sbr.rel (0) target = $region40
            $region39: #{_lambda_.4} parent=31 // pred_region
              %s145 = ssub.s32 16, 1
              loop: start=0, step=1, limit=1
              $region41: #{_lambda_.4} parent=39 // loop_pre_header
                _
              $region42: #{_lambda_.4} parent=39 // loop_header
                %s147 = sphi 0, %s151
                %p148 = scmp.ge.s32.totalorder %s147, 1
                %s152 = sphi %s137, %s137
                %s153 = sphi %s134, %s134
              $region43: #{_lambda_.4} parent=39 // loop_header_branch
                %150 = sbr.rel (%p148) target = $region47
              $region44: #{_lambda_.4} parent=39 // loop_body
                %v154 = vld [vmem:[%s152] sm:%s145]
                %155 = vst [vmem:[%s153] sm:%s145] %v154
                %v156 = vld [vmem:[%s152 + $0x4] sm:%s145]
                %157 = vst [vmem:[%s153 + $0x4] sm:%s145] %v156
                %v158 = vld [vmem:[%s152 + $0x8] sm:%s145]
                %159 = vst [vmem:[%s153 + $0x8] sm:%s145] %v158
                %v160 = vld [vmem:[%s152 + $0xc] sm:%s145]
                %161 = vst [vmem:[%s153 + $0xc] sm:%s145] %v160
                %v162 = vld [vmem:[%s152 + $0x10] sm:%s145]
                %163 = vst [vmem:[%s153 + $0x10] sm:%s145] %v162
                %v164 = vld [vmem:[%s152 + $0x14] sm:%s145]
                %165 = vst [vmem:[%s153 + $0x14] sm:%s145] %v164
                %v166 = vld [vmem:[%s152 + $0x18] sm:%s145]
                %167 = vst [vmem:[%s153 + $0x18] sm:%s145] %v166
                %v168 = vld [vmem:[%s152 + $0x1c] sm:%s145]
                %169 = vst [vmem:[%s153 + $0x1c] sm:%s145] %v168
                %v170 = vld [vmem:[%s152 + $0x20] sm:%s145]
                %171 = vst [vmem:[%s153 + $0x20] sm:%s145] %v170
                %v172 = vld [vmem:[%s152 + $0x24] sm:%s145]
                %173 = vst [vmem:[%s153 + $0x24] sm:%s145] %v172
                %v174 = vld [vmem:[%s152 + $0x28] sm:%s145]
                %175 = vst [vmem:[%s153 + $0x28] sm:%s145] %v174
                %v176 = vld [vmem:[%s152 + $0x2c] sm:%s145]
                %177 = vst [vmem:[%s153 + $0x2c] sm:%s145] %v176
                %v178 = vld [vmem:[%s152 + $0x30] sm:%s145]
                %179 = vst [vmem:[%s153 + $0x30] sm:%s145] %v178
                %v180 = vld [vmem:[%s152 + $0x34] sm:%s145]
                %181 = vst [vmem:[%s153 + $0x34] sm:%s145] %v180
                %v182 = vld [vmem:[%s152 + $0x38] sm:%s145]
                %183 = vst [vmem:[%s153 + $0x38] sm:%s145] %v182
                %v184 = vld [vmem:[%s152 + $0x3c] sm:%s145]
                %185 = vst [vmem:[%s153 + $0x3c] sm:%s145] %v184
                %v186 = vld [vmem:[%s152 + $0x40] sm:%s145]
                %187 = vst [vmem:[%s153 + $0x40] sm:%s145] %v186
                %v188 = vld [vmem:[%s152 + $0x44] sm:%s145]
                %189 = vst [vmem:[%s153 + $0x44] sm:%s145] %v188
                %v190 = vld [vmem:[%s152 + $0x90] sm:%s145]
                %191 = vst [vmem:[%s153 + $0x48] sm:%s145] %v190
                %v192 = vld [vmem:[%s152 + $0x94] sm:%s145]
                %193 = vst [vmem:[%s153 + $0x4c] sm:%s145] %v192
                %v194 = vld [vmem:[%s152 + $0x98] sm:%s145]
                %195 = vst [vmem:[%s153 + $0x50] sm:%s145] %v194
                %v196 = vld [vmem:[%s152 + $0x9c] sm:%s145]
                %197 = vst [vmem:[%s153 + $0x54] sm:%s145] %v196
                %v198 = vld [vmem:[%s152 + $0xa0] sm:%s145]
                %199 = vst [vmem:[%s153 + $0x58] sm:%s145] %v198
                %v200 = vld [vmem:[%s152 + $0xa4] sm:%s145]
                %201 = vst [vmem:[%s153 + $0x5c] sm:%s145] %v200
                %v202 = vld [vmem:[%s152 + $0xa8] sm:%s145]
                %203 = vst [vmem:[%s153 + $0x60] sm:%s145] %v202
                %v204 = vld [vmem:[%s152 + $0xac] sm:%s145]
                %205 = vst [vmem:[%s153 + $0x64] sm:%s145] %v204
                %v206 = vld [vmem:[%s152 + $0xb0] sm:%s145]
                %207 = vst [vmem:[%s153 + $0x68] sm:%s145] %v206
                %v208 = vld [vmem:[%s152 + $0xb4] sm:%s145]
                %209 = vst [vmem:[%s153 + $0x6c] sm:%s145] %v208
                %v210 = vld [vmem:[%s152 + $0xb8] sm:%s145]
                %211 = vst [vmem:[%s153 + $0x70] sm:%s145] %v210
                %v212 = vld [vmem:[%s152 + $0xbc] sm:%s145]
                %213 = vst [vmem:[%s153 + $0x74] sm:%s145] %v212
                %v214 = vld [vmem:[%s152 + $0xc0] sm:%s145]
                %215 = vst [vmem:[%s153 + $0x78] sm:%s145] %v214
                %v216 = vld [vmem:[%s152 + $0xc4] sm:%s145]
                %217 = vst [vmem:[%s153 + $0x7c] sm:%s145] %v216
                %v218 = vld [vmem:[%s152 + $0xc8] sm:%s145]
                %219 = vst [vmem:[%s153 + $0x80] sm:%s145] %v218
                %v220 = vld [vmem:[%s152 + $0xcc] sm:%s145]
                %221 = vst [vmem:[%s153 + $0x84] sm:%s145] %v220
                %v222 = vld [vmem:[%s152 + $0xd0] sm:%s145]
                %223 = vst [vmem:[%s153 + $0x88] sm:%s145] %v222
                %v224 = vld [vmem:[%s152 + $0xd4] sm:%s145]
                %225 = vst [vmem:[%s153 + $0x8c] sm:%s145] %v224
                %v226 = vld [vmem:[%s152 + $0x120] sm:%s145]
                %227 = vst [vmem:[%s153 + $0x90] sm:%s145] %v226
                %v228 = vld [vmem:[%s152 + $0x124] sm:%s145]
                %229 = vst [vmem:[%s153 + $0x94] sm:%s145] %v228
                %v230 = vld [vmem:[%s152 + $0x128] sm:%s145]
                %231 = vst [vmem:[%s153 + $0x98] sm:%s145] %v230
                %v232 = vld [vmem:[%s152 + $0x12c] sm:%s145]
                %233 = vst [vmem:[%s153 + $0x9c] sm:%s145] %v232
                %v234 = vld [vmem:[%s152 + $0x130] sm:%s145]
                %235 = vst [vmem:[%s153 + $0xa0] sm:%s145] %v234
                %v236 = vld [vmem:[%s152 + $0x134] sm:%s145]
                %237 = vst [vmem:[%s153 + $0xa4] sm:%s145] %v236
                %v238 = vld [vmem:[%s152 + $0x138] sm:%s145]
                %239 = vst [vmem:[%s153 + $0xa8] sm:%s145] %v238
                %v240 = vld [vmem:[%s152 + $0x13c] sm:%s145]
                %241 = vst [vmem:[%s153 + $0xac] sm:%s145] %v240
                %v242 = vld [vmem:[%s152 + $0x140] sm:%s145]
                %243 = vst [vmem:[%s153 + $0xb0] sm:%s145] %v242
                %v244 = vld [vmem:[%s152 + $0x144] sm:%s145]
                %245 = vst [vmem:[%s153 + $0xb4] sm:%s145] %v244
                %v246 = vld [vmem:[%s152 + $0x148] sm:%s145]
                %247 = vst [vmem:[%s153 + $0xb8] sm:%s145] %v246
                %v248 = vld [vmem:[%s152 + $0x14c] sm:%s145]
                %249 = vst [vmem:[%s153 + $0xbc] sm:%s145] %v248
                %v250 = vld [vmem:[%s152 + $0x150] sm:%s145]
                %251 = vst [vmem:[%s153 + $0xc0] sm:%s145] %v250
                %v252 = vld [vmem:[%s152 + $0x154] sm:%s145]
                %253 = vst [vmem:[%s153 + $0xc4] sm:%s145] %v252
                %v254 = vld [vmem:[%s152 + $0x158] sm:%s145]
                %255 = vst [vmem:[%s153 + $0xc8] sm:%s145] %v254
                %v256 = vld [vmem:[%s152 + $0x15c] sm:%s145]
                %257 = vst [vmem:[%s153 + $0xcc] sm:%s145] %v256
                %v258 = vld [vmem:[%s152 + $0x160] sm:%s145]
                %259 = vst [vmem:[%s153 + $0xd0] sm:%s145] %v258
                %v260 = vld [vmem:[%s152 + $0x164] sm:%s145]
                %261 = vst [vmem:[%s153 + $0xd4] sm:%s145] %v260
                %v262 = vld [vmem:[%s152 + $0x1b0] sm:%s145]
                %263 = vst [vmem:[%s153 + $0xd8] sm:%s145] %v262
                %v264 = vld [vmem:[%s152 + $0x1b4] sm:%s145]
                %265 = vst [vmem:[%s153 + $0xdc] sm:%s145] %v264
                %v266 = vld [vmem:[%s152 + $0x1b8] sm:%s145]
                %267 = vst [vmem:[%s153 + $0xe0] sm:%s145] %v266
                %v268 = vld [vmem:[%s152 + $0x1bc] sm:%s145]
                %269 = vst [vmem:[%s153 + $0xe4] sm:%s145] %v268
                %v270 = vld [vmem:[%s152 + $0x1c0] sm:%s145]
                %271 = vst [vmem:[%s153 + $0xe8] sm:%s145] %v270
                %v272 = vld [vmem:[%s152 + $0x1c4] sm:%s145]
                %273 = vst [vmem:[%s153 + $0xec] sm:%s145] %v272
                %v274 = vld [vmem:[%s152 + $0x1c8] sm:%s145]
                %275 = vst [vmem:[%s153 + $0xf0] sm:%s145] %v274
                %v276 = vld [vmem:[%s152 + $0x1cc] sm:%s145]
                %277 = vst [vmem:[%s153 + $0xf4] sm:%s145] %v276
                %v278 = vld [vmem:[%s152 + $0x1d0] sm:%s145]
                %279 = vst [vmem:[%s153 + $0xf8] sm:%s145] %v278
                %v280 = vld [vmem:[%s152 + $0x1d4] sm:%s145]
                %281 = vst [vmem:[%s153 + $0xfc] sm:%s145] %v280
                %v282 = vld [vmem:[%s152 + $0x1d8] sm:%s145]
                %283 = vst [vmem:[%s153 + $0x100] sm:%s145] %v282
                %v284 = vld [vmem:[%s152 + $0x1dc] sm:%s145]
                %285 = vst [vmem:[%s153 + $0x104] sm:%s145] %v284
                %v286 = vld [vmem:[%s152 + $0x1e0] sm:%s145]
                %287 = vst [vmem:[%s153 + $0x108] sm:%s145] %v286
                %v288 = vld [vmem:[%s152 + $0x1e4] sm:%s145]
                %289 = vst [vmem:[%s153 + $0x10c] sm:%s145] %v288
                %v290 = vld [vmem:[%s152 + $0x1e8] sm:%s145]
                %291 = vst [vmem:[%s153 + $0x110] sm:%s145] %v290
                %v292 = vld [vmem:[%s152 + $0x1ec] sm:%s145]
                %293 = vst [vmem:[%s153 + $0x114] sm:%s145] %v292
                %v294 = vld [vmem:[%s152 + $0x1f0] sm:%s145]
                %295 = vst [vmem:[%s153 + $0x118] sm:%s145] %v294
                %v296 = vld [vmem:[%s152 + $0x1f4] sm:%s145]
                %297 = vst [vmem:[%s153 + $0x11c] sm:%s145] %v296
              $region45: #{_lambda_.4} parent=39 // loop_footer
                %s151 = sadd.s32 1, %s147
              $region46: #{_lambda_.4} parent=39 // loop_footer_branch
                %146 = sbr.rel target = $region42
              $region47: #{_lambda_.4} parent=39 // loop_exit
                _
            $region40: #{_lambda_.4} parent=31 // pred_fallthru
              _
          $region32: #{_lambda_.4} parent=27 // pred_fallthru
            _
          %462 = vnop
        $region28: #{_lambda_.4} parent=23 // pred_fallthru
          _
      $region24: #{_lambda_.4} parent=5 // pred_fallthru
        _
      %p463 = scmp.le.s32.totalorder 1, %s9
      %p464 = scmp.lt.s32.totalorder %s9, 3
      %p465 = pnand %p463, %p464
      %p466 = pneg %p465
      // Predicated region
      $region66: #{_lambda_.4} parent=5 // pred_check
        _
      $region67: #{_lambda_.4} parent=5 // pred_check_branch
        %468 = sbr.rel (%p465) target = $region69
      $region68: #{_lambda_.4} parent=5 // pred_region
        %s469 = ssub.s32 %s9, 1
        %s470 = sand.u32 %s22, 1
        %s471 = sand.u32 %s22, 1
        %s472 = smul.addr %s471, 288
        %s473 = scalar_lea.vmem [#allocation2], %s472
        // Predicated region
        $region70: #{_lambda_.4} parent=68 // pred_check
          %p474 = pneg %p35
        $region71: #{_lambda_.4} parent=68 // pred_check_branch
          %476 = sbr.rel (%p474) target = $region73
        $region72: #{_lambda_.4} parent=68 // pred_region
          _
        $region73: #{_lambda_.4} parent=68 // pred_fallthru
          _
        %s477 = sand.u32 %s22, 1
        %s478 = sand.u32 %s22, 1
        %s479 = smul.addr %s478, 288
        %s480 = scalar_lea.vmem [#allocation2], %s479
        %p481 = pneg %p35
        %p482 = pneg %p32
        %p483 = pneg %p56
        %p484 = pneg %p53
        %p485 = pneg %p77
        %p486 = pneg %p74
        %p487 = pneg %p103
        %p488 = pneg %p100
        %s489 = smul.u32 18, %s14
        %p490 = scmp.lt.s32.totalorder %s489, 35
        %s491 = scalar_select %p490, %s489, 35
        %s492 = smul.addr %s491, 4
        %s493 = scalar_lea.vmem %s3, %s492
        %s494 = smul.u32 18, %s14
        %s495 = smul.u32 18, %s14
        %p496 = scmp.lt.s32.totalorder %s495, 35
        %s497 = scalar_select %p496, %s495, 35
        %s498 = smul.addr %s497, 4
        %s499 = scalar_lea.vmem %s3, %s498
        %s500 = smul.u32 18, %s14
        %v502 = vld [vmem:[%s473] sm:$0xf]
        %v503 = vld [vmem:[%s473 + $0x4] sm:$0xf]
        %v504 = vld [vmem:[%s473 + $0x8] sm:$0xf]
        %v505 = vld [vmem:[%s473 + $0xc] sm:$0xf]
        %v506 = vld [vmem:[%s473 + $0x10] sm:$0xf]
        %v507 = vld [vmem:[%s473 + $0x14] sm:$0xf]
        %v508 = vld [vmem:[%s473 + $0x18] sm:$0xf]
        %v509 = vld [vmem:[%s473 + $0x1c] sm:$0xf]
        %v510 = vld [vmem:[%s473 + $0x20] sm:$0xf]
        %v511 = vld [vmem:[%s473 + $0x24] sm:$0xf]
        %v512 = vld [vmem:[%s473 + $0x28] sm:$0xf]
        %v513 = vld [vmem:[%s473 + $0x2c] sm:$0xf]
        %v514 = vld [vmem:[%s473 + $0x30] sm:$0xf]
        %v515 = vld [vmem:[%s473 + $0x34] sm:$0xf]
        %v516 = vld [vmem:[%s473 + $0x38] sm:$0xf]
        %v517 = vld [vmem:[%s473 + $0x3c] sm:$0xf]
        %v518 = vld [vmem:[%s473 + $0x40] sm:$0xf]
        %v519 = vld [vmem:[%s473 + $0x44] sm:$0xf]
        %v520 = vld [vmem:[%s473 + $0x48] sm:$0xf]
        %v521 = vld [vmem:[%s473 + $0x4c] sm:$0xf]
        %v522 = vld [vmem:[%s473 + $0x50] sm:$0xf]
        %v523 = vld [vmem:[%s473 + $0x54] sm:$0xf]
        %v524 = vld [vmem:[%s473 + $0x58] sm:$0xf]
        %v525 = vld [vmem:[%s473 + $0x5c] sm:$0xf]
        %v526 = vld [vmem:[%s473 + $0x60] sm:$0xf]
        %v527 = vld [vmem:[%s473 + $0x64] sm:$0xf]
        %v528 = vld [vmem:[%s473 + $0x68] sm:$0xf]
        %v529 = vld [vmem:[%s473 + $0x6c] sm:$0xf]
        %v530 = vld [vmem:[%s473 + $0x70] sm:$0xf]
        %v531 = vld [vmem:[%s473 + $0x74] sm:$0xf]
        %v532 = vld [vmem:[%s473 + $0x78] sm:$0xf]
        %v533 = vld [vmem:[%s473 + $0x7c] sm:$0xf]
        %v534 = vld [vmem:[%s473 + $0x80] sm:$0xf]
        %v535 = vld [vmem:[%s473 + $0x84] sm:$0xf]
        %v536 = vld [vmem:[%s473 + $0x88] sm:$0xf]
        %v537 = vld [vmem:[%s473 + $0x8c] sm:$0xf]
        %v538 = vld [vmem:[%s473 + $0x90] sm:$0xf]
        %v539 = vld [vmem:[%s473 + $0x94] sm:$0xf]
        %v540 = vld [vmem:[%s473 + $0x98] sm:$0xf]
        %v541 = vld [vmem:[%s473 + $0x9c] sm:$0xf]
        %v542 = vld [vmem:[%s473 + $0xa0] sm:$0xf]
        %v543 = vld [vmem:[%s473 + $0xa4] sm:$0xf]
        %v544 = vld [vmem:[%s473 + $0xa8] sm:$0xf]
        %v545 = vld [vmem:[%s473 + $0xac] sm:$0xf]
        %v546 = vld [vmem:[%s473 + $0xb0] sm:$0xf]
        %v547 = vld [vmem:[%s473 + $0xb4] sm:$0xf]
        %v548 = vld [vmem:[%s473 + $0xb8] sm:$0xf]
        %v549 = vld [vmem:[%s473 + $0xbc] sm:$0xf]
        %v550 = vld [vmem:[%s473 + $0xc0] sm:$0xf]
        %v551 = vld [vmem:[%s473 + $0xc4] sm:$0xf]
        %v552 = vld [vmem:[%s473 + $0xc8] sm:$0xf]
        %v553 = vld [vmem:[%s473 + $0xcc] sm:$0xf]
        %v554 = vld [vmem:[%s473 + $0xd0] sm:$0xf]
        %v555 = vld [vmem:[%s473 + $0xd4] sm:$0xf]
        %v556 = vld [vmem:[%s473 + $0xd8] sm:$0xf]
        %v557 = vld [vmem:[%s473 + $0xdc] sm:$0xf]
        %v558 = vld [vmem:[%s473 + $0xe0] sm:$0xf]
        %v559 = vld [vmem:[%s473 + $0xe4] sm:$0xf]
        %v560 = vld [vmem:[%s473 + $0xe8] sm:$0xf]
        %v561 = vld [vmem:[%s473 + $0xec] sm:$0xf]
        %v562 = vld [vmem:[%s473 + $0xf0] sm:$0xf]
        %v563 = vld [vmem:[%s473 + $0xf4] sm:$0xf]
        %v564 = vld [vmem:[%s473 + $0xf8] sm:$0xf]
        %v565 = vld [vmem:[%s473 + $0xfc] sm:$0xf]
        %v566 = vld [vmem:[%s473 + $0x100] sm:$0xf]
        %v567 = vld [vmem:[%s473 + $0x104] sm:$0xf]
        %v568 = vld [vmem:[%s473 + $0x108] sm:$0xf]
        %v569 = vld [vmem:[%s473 + $0x10c] sm:$0xf]
        %v570 = vld [vmem:[%s473 + $0x110] sm:$0xf]
        %v571 = vld [vmem:[%s473 + $0x114] sm:$0xf]
        %v572 = vld [vmem:[%s473 + $0x118] sm:$0xf]
        %v573 = vld [vmem:[%s473 + $0x11c] sm:$0xf]
        %v574 = vld [vmem:[%s1] sm:$0xf]
        %v575 = vld [vmem:[%s1 + $0x4] sm:$0xf]
        %v576 = vld [vmem:[%s1 + $0x8] sm:$0xf]
        %v577 = vld [vmem:[%s1 + $0xc] sm:$0xf]
        %v578 = vld [vmem:[%s1 + $0x10] sm:$0x3]
        %v651 = vunpack.c.l.b16 %v502
        %v652 = vunpack.c.l.b16 %v503
        %v653 = vunpack.c.l.b16 %v504
        %v654 = vunpack.c.l.b16 %v505
        %v655 = vunpack.c.l.b16 %v506
        %v656 = vunpack.c.l.b16 %v507
        %v657 = vunpack.c.l.b16 %v508
        %v658 = vunpack.c.l.b16 %v509
        %v659 = vunpack.c.l.b16 %v510
        %v660 = vunpack.c.l.b16 %v511
        %v661 = vunpack.c.l.b16 %v512
        %v662 = vunpack.c.l.b16 %v513
        %v663 = vunpack.c.l.b16 %v514
        %v664 = vunpack.c.l.b16 %v515
        %v665 = vunpack.c.l.b16 %v516
        %v666 = vunpack.c.l.b16 %v517
        %v667 = vunpack.c.l.b16 %v518
        %v668 = vunpack.c.l.b16 %v519
        %v669 = vunpack.c.l.b16 %v520
        %v670 = vunpack.c.l.b16 %v521
        %v671 = vunpack.c.l.b16 %v522
        %v672 = vunpack.c.l.b16 %v523
        %v673 = vunpack.c.l.b16 %v524
        %v674 = vunpack.c.l.b16 %v525
        %v675 = vunpack.c.l.b16 %v526
        %v676 = vunpack.c.l.b16 %v527
        %v677 = vunpack.c.l.b16 %v528
        %v678 = vunpack.c.l.b16 %v529
        %v679 = vunpack.c.l.b16 %v530
        %v680 = vunpack.c.l.b16 %v531
        %v681 = vunpack.c.l.b16 %v532
        %v682 = vunpack.c.l.b16 %v533
        %v683 = vunpack.c.l.b16 %v534
        %v684 = vunpack.c.l.b16 %v535
        %v685 = vunpack.c.l.b16 %v536
        %v686 = vunpack.c.l.b16 %v537
        %v687 = vunpack.c.l.b16 %v538
        %v688 = vunpack.c.l.b16 %v539
        %v689 = vunpack.c.l.b16 %v540
        %v690 = vunpack.c.l.b16 %v541
        %v691 = vunpack.c.l.b16 %v542
        %v692 = vunpack.c.l.b16 %v543
        %v693 = vunpack.c.l.b16 %v544
        %v694 = vunpack.c.l.b16 %v545
        %v695 = vunpack.c.l.b16 %v546
        %v696 = vunpack.c.l.b16 %v547
        %v697 = vunpack.c.l.b16 %v548
        %v698 = vunpack.c.l.b16 %v549
        %v699 = vunpack.c.l.b16 %v550
        %v700 = vunpack.c.l.b16 %v551
        %v701 = vunpack.c.l.b16 %v552
        %v702 = vunpack.c.l.b16 %v553
        %v703 = vunpack.c.l.b16 %v554
        %v704 = vunpack.c.l.b16 %v555
        %v705 = vunpack.c.l.b16 %v556
        %v706 = vunpack.c.l.b16 %v557
        %v707 = vunpack.c.l.b16 %v558
        %v708 = vunpack.c.l.b16 %v559
        %v709 = vunpack.c.l.b16 %v560
        %v710 = vunpack.c.l.b16 %v561
        %v711 = vunpack.c.l.b16 %v562
        %v712 = vunpack.c.l.b16 %v563
        %v713 = vunpack.c.l.b16 %v564
        %v714 = vunpack.c.l.b16 %v565
        %v715 = vunpack.c.l.b16 %v566
        %v716 = vunpack.c.l.b16 %v567
        %v717 = vunpack.c.l.b16 %v568
        %v718 = vunpack.c.l.b16 %v569
        %v719 = vunpack.c.l.b16 %v570
        %v720 = vunpack.c.l.b16 %v571
        %v721 = vunpack.c.l.b16 %v572
        %v722 = vunpack.c.l.b16 %v573
        %v723 = vpack.c.b16 %v652, %v651
        %v724 = vpack.c.b16 %v654, %v653
        %v725 = vpack.c.b16 %v656, %v655
        %v726 = vpack.c.b16 %v658, %v657
        %v727 = vpack.c.b16 %v660, %v659
        %v728 = vpack.c.b16 %v662, %v661
        %v729 = vpack.c.b16 %v664, %v663
        %v730 = vpack.c.b16 %v666, %v665
        %v731 = vpack.c.b16 %v668, %v667
        %v732 = vpack.c.b16 %v670, %v669
        %v733 = vpack.c.b16 %v672, %v671
        %v734 = vpack.c.b16 %v674, %v673
        %v735 = vpack.c.b16 %v676, %v675
        %v736 = vpack.c.b16 %v678, %v677
        %v737 = vpack.c.b16 %v680, %v679
        %v738 = vpack.c.b16 %v682, %v681
        %v739 = vpack.c.b16 %v684, %v683
        %v740 = vpack.c.b16 %v686, %v685
        %v741 = vpack.c.b16 %v688, %v687
        %v742 = vpack.c.b16 %v690, %v689
        %v743 = vpack.c.b16 %v692, %v691
        %v744 = vpack.c.b16 %v694, %v693
        %v745 = vpack.c.b16 %v696, %v695
        %v746 = vpack.c.b16 %v698, %v697
        %v747 = vpack.c.b16 %v700, %v699
        %v748 = vpack.c.b16 %v702, %v701
        %v749 = vpack.c.b16 %v704, %v703
        %v750 = vpack.c.b16 %v706, %v705
        %v751 = vpack.c.b16 %v708, %v707
        %v752 = vpack.c.b16 %v710, %v709
        %v753 = vpack.c.b16 %v712, %v711
        %v754 = vpack.c.b16 %v714, %v713
        %v755 = vpack.c.b16 %v716, %v715
        %v756 = vpack.c.b16 %v718, %v717
        %v757 = vpack.c.b16 %v720, %v719
        %v758 = vpack.c.b16 %v722, %v721
        %v764 = vunpack.c.l.b16 %v574
        %v765 = vunpack.c.l.b16 %v575
        %v766 = vunpack.c.l.b16 %v576
        %v767 = vunpack.c.l.b16 %v577
        %v768 = vunpack.c.l.b16 %v578
        %v769 = vpack.c.b16 %v765, %v764
        %v770 = vpack.c.b16 %v767, %v766
        %v771 = vpack.c.b16 %v768, %v768
        %vm774 = vcmask 293888
        %v776 = vsel %vm774, %v723, 0
        %v779 = vsel %vm774, %v724, 0
        %v782 = vsel %vm774, %v725, 0
        %v785 = vsel %vm774, %v726, 0
        %v788 = vsel %vm774, %v727, 0
        %v791 = vsel %vm774, %v728, 0
        %v794 = vsel %vm774, %v729, 0
        %v797 = vsel %vm774, %v730, 0
        %v800 = vsel %vm774, %v731, 0
        %v803 = vsel %vm774, %v732, 0
        %v806 = vsel %vm774, %v733, 0
        %v809 = vsel %vm774, %v734, 0
        %v812 = vsel %vm774, %v735, 0
        %v815 = vsel %vm774, %v736, 0
        %v818 = vsel %vm774, %v737, 0
        %v821 = vsel %vm774, %v738, 0
        %v824 = vsel %vm774, %v739, 0
        %v827 = vsel %vm774, %v740, 0
        %v830 = vsel %vm774, %v741, 0
        %v833 = vsel %vm774, %v742, 0
        %v836 = vsel %vm774, %v743, 0
        %v839 = vsel %vm774, %v744, 0
        %v842 = vsel %vm774, %v745, 0
        %v845 = vsel %vm774, %v746, 0
        %v848 = vsel %vm774, %v747, 0
        %v851 = vsel %vm774, %v748, 0
        %v854 = vsel %vm774, %v749, 0
        %v857 = vsel %vm774, %v750, 0
        %v860 = vsel %vm774, %v751, 0
        %v863 = vsel %vm774, %v752, 0
        %v866 = vsel %vm774, %v753, 0
        %v869 = vsel %vm774, %v754, 0
        %v872 = vsel %vm774, %v755, 0
        %v875 = vsel %vm774, %v756, 0
        %v878 = vsel %vm774, %v757, 0
        %v881 = vsel %vm774, %v758, 0
        %vm883 = vcmask 1041408
        %v885 = vsel %vm883, %v771, 0
        %887 = vmatpush.bf16.msra.mxu0 0
        %888 = vmatpush.bf16.msra.mxu0 0
        %889 = vmatpush.bf16.msra.mxu0 0
        %890 = vmatpush.bf16.msra.mxu0 0
        %891 = vmatpush.bf16.msra.mxu0 0
        %892 = vmatpush.bf16.msra.mxu0 %v885
        %893 = vmatpush.bf16.msra.mxu0 %v770
        %894 = vmatpush.bf16.msra.mxu0 %v769
        %895 = vmatmul.bf16.gmra.mxu0 %v776
        %v896 = vpop.f32.mrf.mxu0
        %v897 = vadd.f32 0.0, %v896
        %v898 = vpop.f32.mrf.mxu0
        %v899 = vadd.f32 0.0, %v898
        %900 = vmatmul.bf16.gmra.mxu0 %v779
        %v901 = vpop.f32.mrf.mxu0
        %v902 = vadd.f32 0.0, %v901
        %v903 = vpop.f32.mrf.mxu0
        %v904 = vadd.f32 0.0, %v903
        %905 = vmatmul.bf16.gmra.mxu0 %v782
        %v906 = vpop.f32.mrf.mxu0
        %v907 = vadd.f32 0.0, %v906
        %v908 = vpop.f32.mrf.mxu0
        %v909 = vadd.f32 0.0, %v908
        %910 = vmatmul.bf16.gmra.mxu0 %v785
        %v911 = vpop.f32.mrf.mxu0
        %v912 = vadd.f32 0.0, %v911
        %v913 = vpop.f32.mrf.mxu0
        %v914 = vadd.f32 0.0, %v913
        %915 = vmatmul.bf16.gmra.mxu0 %v788
        %v916 = vpop.f32.mrf.mxu0
        %v917 = vadd.f32 0.0, %v916
        %v918 = vpop.f32.mrf.mxu0
        %v919 = vadd.f32 0.0, %v918
        %920 = vmatmul.bf16.gmra.mxu0 %v791
        %v921 = vpop.f32.mrf.mxu0
        %v922 = vadd.f32 0.0, %v921
        %v923 = vpop.f32.mrf.mxu0
        %v924 = vadd.f32 0.0, %v923
        %925 = vmatmul.bf16.gmra.mxu0 %v794
        %v926 = vpop.f32.mrf.mxu0
        %v927 = vadd.f32 0.0, %v926
        %v928 = vpop.f32.mrf.mxu0
        %v929 = vadd.f32 0.0, %v928
        %930 = vmatmul.bf16.gmra.mxu0 %v797
        %v931 = vpop.f32.mrf.mxu0
        %v932 = vadd.f32 0.0, %v931
        %v933 = vpop.f32.mrf.mxu0
        %v934 = vadd.f32 0.0, %v933
        %935 = vmatmul.bf16.gmra.mxu0 %v800
        %v936 = vpop.f32.mrf.mxu0
        %v937 = vadd.f32 0.0, %v936
        %v938 = vpop.f32.mrf.mxu0
        %v939 = vadd.f32 0.0, %v938
        %940 = vmatmul.bf16.gmra.mxu0 %v803
        %v941 = vpop.f32.mrf.mxu0
        %v942 = vadd.f32 0.0, %v941
        %v943 = vpop.f32.mrf.mxu0
        %v944 = vadd.f32 0.0, %v943
        %945 = vmatmul.bf16.gmra.mxu0 %v806
        %v946 = vpop.f32.mrf.mxu0
        %v947 = vadd.f32 0.0, %v946
        %v948 = vpop.f32.mrf.mxu0
        %v949 = vadd.f32 0.0, %v948
        %950 = vmatmul.bf16.gmra.mxu0 %v809
        %v951 = vpop.f32.mrf.mxu0
        %v952 = vadd.f32 0.0, %v951
        %v953 = vpop.f32.mrf.mxu0
        %v954 = vadd.f32 0.0, %v953
        %955 = vmatmul.bf16.gmra.mxu0 %v812
        %v956 = vpop.f32.mrf.mxu0
        %v957 = vadd.f32 0.0, %v956
        %v958 = vpop.f32.mrf.mxu0
        %v959 = vadd.f32 0.0, %v958
        %960 = vmatmul.bf16.gmra.mxu0 %v815
        %v961 = vpop.f32.mrf.mxu0
        %v962 = vadd.f32 0.0, %v961
        %v963 = vpop.f32.mrf.mxu0
        %v964 = vadd.f32 0.0, %v963
        %965 = vmatmul.bf16.gmra.mxu0 %v818
        %v966 = vpop.f32.mrf.mxu0
        %v967 = vadd.f32 0.0, %v966
        %v968 = vpop.f32.mrf.mxu0
        %v969 = vadd.f32 0.0, %v968
        %970 = vmatmul.bf16.gmra.mxu0 %v821
        %v971 = vpop.f32.mrf.mxu0
        %v972 = vadd.f32 0.0, %v971
        %v973 = vpop.f32.mrf.mxu0
        %v974 = vadd.f32 0.0, %v973
        %975 = vmatmul.bf16.gmra.mxu0 %v824
        %v976 = vpop.f32.mrf.mxu0
        %v977 = vadd.f32 0.0, %v976
        %v978 = vpop.f32.mrf.mxu0
        %v979 = vadd.f32 0.0, %v978
        %980 = vmatmul.bf16.gmra.mxu0 %v827
        %v981 = vpop.f32.mrf.mxu0
        %v982 = vadd.f32 0.0, %v981
        %v983 = vpop.f32.mrf.mxu0
        %v984 = vadd.f32 0.0, %v983
        %985 = vmatmul.bf16.gmra.mxu0 %v830
        %v986 = vpop.f32.mrf.mxu0
        %v987 = vadd.f32 0.0, %v986
        %v988 = vpop.f32.mrf.mxu0
        %v989 = vadd.f32 0.0, %v988
        %990 = vmatmul.bf16.gmra.mxu0 %v833
        %v991 = vpop.f32.mrf.mxu0
        %v992 = vadd.f32 0.0, %v991
        %v993 = vpop.f32.mrf.mxu0
        %v994 = vadd.f32 0.0, %v993
        %995 = vmatmul.bf16.gmra.mxu0 %v836
        %v996 = vpop.f32.mrf.mxu0
        %v997 = vadd.f32 0.0, %v996
        %v998 = vpop.f32.mrf.mxu0
        %v999 = vadd.f32 0.0, %v998
        %1000 = vmatmul.bf16.gmra.mxu0 %v839
        %v1001 = vpop.f32.mrf.mxu0
        %v1002 = vadd.f32 0.0, %v1001
        %v1003 = vpop.f32.mrf.mxu0
        %v1004 = vadd.f32 0.0, %v1003
        %1005 = vmatmul.bf16.gmra.mxu0 %v842
        %v1006 = vpop.f32.mrf.mxu0
        %v1007 = vadd.f32 0.0, %v1006
        %v1008 = vpop.f32.mrf.mxu0
        %v1009 = vadd.f32 0.0, %v1008
        %1010 = vmatmul.bf16.gmra.mxu0 %v845
        %v1011 = vpop.f32.mrf.mxu0
        %v1012 = vadd.f32 0.0, %v1011
        %v1013 = vpop.f32.mrf.mxu0
        %v1014 = vadd.f32 0.0, %v1013
        %1015 = vmatmul.bf16.gmra.mxu0 %v848
        %v1016 = vpop.f32.mrf.mxu0
        %v1017 = vadd.f32 0.0, %v1016
        %v1018 = vpop.f32.mrf.mxu0
        %v1019 = vadd.f32 0.0, %v1018
        %1020 = vmatmul.bf16.gmra.mxu0 %v851
        %v1021 = vpop.f32.mrf.mxu0
        %v1022 = vadd.f32 0.0, %v1021
        %v1023 = vpop.f32.mrf.mxu0
        %v1024 = vadd.f32 0.0, %v1023
        %1025 = vmatmul.bf16.gmra.mxu0 %v854
        %v1026 = vpop.f32.mrf.mxu0
        %v1027 = vadd.f32 0.0, %v1026
        %v1028 = vpop.f32.mrf.mxu0
        %v1029 = vadd.f32 0.0, %v1028
        %1030 = vmatmul.bf16.gmra.mxu0 %v857
        %v1031 = vpop.f32.mrf.mxu0
        %v1032 = vadd.f32 0.0, %v1031
        %v1033 = vpop.f32.mrf.mxu0
        %v1034 = vadd.f32 0.0, %v1033
        %1035 = vmatmul.bf16.gmra.mxu0 %v860
        %v1036 = vpop.f32.mrf.mxu0
        %v1037 = vadd.f32 0.0, %v1036
        %v1038 = vpop.f32.mrf.mxu0
        %v1039 = vadd.f32 0.0, %v1038
        %1040 = vmatmul.bf16.gmra.mxu0 %v863
        %v1041 = vpop.f32.mrf.mxu0
        %v1042 = vadd.f32 0.0, %v1041
        %v1043 = vpop.f32.mrf.mxu0
        %v1044 = vadd.f32 0.0, %v1043
        %1045 = vmatmul.bf16.gmra.mxu0 %v866
        %v1046 = vpop.f32.mrf.mxu0
        %v1047 = vadd.f32 0.0, %v1046
        %v1048 = vpop.f32.mrf.mxu0
        %v1049 = vadd.f32 0.0, %v1048
        %1050 = vmatmul.bf16.gmra.mxu0 %v869
        %v1051 = vpop.f32.mrf.mxu0
        %v1052 = vadd.f32 0.0, %v1051
        %v1053 = vpop.f32.mrf.mxu0
        %v1054 = vadd.f32 0.0, %v1053
        %1055 = vmatmul.bf16.gmra.mxu0 %v872
        %v1056 = vpop.f32.mrf.mxu0
        %v1057 = vadd.f32 0.0, %v1056
        %v1058 = vpop.f32.mrf.mxu0
        %v1059 = vadd.f32 0.0, %v1058
        %1060 = vmatmul.bf16.gmra.mxu0 %v875
        %v1061 = vpop.f32.mrf.mxu0
        %v1062 = vadd.f32 0.0, %v1061
        %v1063 = vpop.f32.mrf.mxu0
        %v1064 = vadd.f32 0.0, %v1063
        %1065 = vmatmul.bf16.gmra.mxu0 %v878
        %v1066 = vpop.f32.mrf.mxu0
        %v1067 = vadd.f32 0.0, %v1066
        %v1068 = vpop.f32.mrf.mxu0
        %v1069 = vadd.f32 0.0, %v1068
        %1070 = vmatmul.bf16.gmra.mxu0 %v881
        %v1071 = vpop.f32.mrf.mxu0
        %v1072 = vadd.f32 0.0, %v1071
        %v1073 = vpop.f32.mrf.mxu0
        %v1074 = vadd.f32 0.0, %v1073
        %1075 = vdwg.mxu0
        %v1076 = vmax.f32 %v897, %v942
        %v1077 = vmax.f32 %v899, %v944
        %v1078 = vmax.f32 %v902, %v947
        %v1079 = vmax.f32 %v904, %v949
        %v1080 = vmax.f32 %v907, %v952
        %v1081 = vmax.f32 %v909, %v954
        %v1082 = vmax.f32 %v912, %v957
        %v1083 = vmax.f32 %v914, %v959
        %v1084 = vmax.f32 %v917, %v962
        %v1085 = vmax.f32 %v919, %v964
        %v1086 = vmax.f32 %v922, %v967
        %v1087 = vmax.f32 %v924, %v969
        %v1088 = vmax.f32 %v927, %v972
        %v1089 = vmax.f32 %v929, %v974
        %v1090 = vmax.f32 %v932, %v977
        %v1091 = vmax.f32 %v934, %v979
        %v1092 = vmax.f32 %v937, %v982
        %v1093 = vmax.f32 %v939, %v984
        %v1094 = vmax.f32 %v987, %v1032
        %v1095 = vmax.f32 %v989, %v1034
        %v1096 = vmax.f32 %v992, %v1037
        %v1097 = vmax.f32 %v994, %v1039
        %v1098 = vmax.f32 %v997, %v1042
        %v1099 = vmax.f32 %v999, %v1044
        %v1100 = vmax.f32 %v1002, %v1047
        %v1101 = vmax.f32 %v1004, %v1049
        %v1102 = vmax.f32 %v1007, %v1052
        %v1103 = vmax.f32 %v1009, %v1054
        %v1104 = vmax.f32 %v1012, %v1057
        %v1105 = vmax.f32 %v1014, %v1059
        %v1106 = vmax.f32 %v1017, %v1062
        %v1107 = vmax.f32 %v1019, %v1064
        %v1108 = vmax.f32 %v1022, %v1067
        %v1109 = vmax.f32 %v1024, %v1069
        %v1110 = vmax.f32 %v1027, %v1072
        %v1111 = vmax.f32 %v1029, %v1074
        %v1112 = vmax.f32 %v1076, %v1094
        %v1113 = vmax.f32 %v1077, %v1095
        %v1114 = vmax.f32 %v1078, %v1096
        %v1115 = vmax.f32 %v1079, %v1097
        %v1116 = vmax.f32 %v1080, %v1098
        %v1117 = vmax.f32 %v1081, %v1099
        %v1118 = vmax.f32 %v1082, %v1100
        %v1119 = vmax.f32 %v1083, %v1101
        %v1120 = vmax.f32 %v1084, %v1102
        %v1121 = vmax.f32 %v1085, %v1103
        %v1122 = vmax.f32 %v1086, %v1104
        %v1123 = vmax.f32 %v1087, %v1105
        %v1124 = vmax.f32 %v1088, %v1106
        %v1125 = vmax.f32 %v1089, %v1107
        %v1126 = vmax.f32 %v1090, %v1108
        %v1127 = vmax.f32 %v1091, %v1109
        %v1128 = vmax.f32 %v1092, %v1110
        %v1129 = vmax.f32 %v1093, %v1111
        %v1130 = vld [vmem:[%s2] sm:$0x1]
        %v1132 = vperm.slane %v1130, 0
        %v1134 = vadd.f32 %v1112, %v1132
        %v1135 = vadd.f32 %v1113, %v1132
        %v1136 = vadd.f32 %v1114, %v1132
        %v1137 = vadd.f32 %v1115, %v1132
        %v1138 = vadd.f32 %v1116, %v1132
        %v1139 = vadd.f32 %v1117, %v1132
        %v1140 = vadd.f32 %v1118, %v1132
        %v1141 = vadd.f32 %v1119, %v1132
        %v1142 = vadd.f32 %v1120, %v1132
        %v1143 = vadd.f32 %v1121, %v1132
        %v1144 = vadd.f32 %v1122, %v1132
        %v1145 = vadd.f32 %v1123, %v1132
        %v1146 = vadd.f32 %v1124, %v1132
        %v1147 = vadd.f32 %v1125, %v1132
        %v1148 = vadd.f32 %v1126, %v1132
        %v1149 = vadd.f32 %v1127, %v1132
        %v1150 = vadd.f32 %v1128, %v1132
        %v1151 = vadd.f32 %v1129, %v1132
        %v1152 = vmax.f32 %v1134, 0.0
        %v1153 = vmax.f32 %v1135, 0.0
        %v1154 = vmax.f32 %v1136, 0.0
        %v1155 = vmax.f32 %v1137, 0.0
        %v1156 = vmax.f32 %v1138, 0.0
        %v1157 = vmax.f32 %v1139, 0.0
        %v1158 = vmax.f32 %v1140, 0.0
        %v1159 = vmax.f32 %v1141, 0.0
        %v1160 = vmax.f32 %v1142, 0.0
        %v1161 = vmax.f32 %v1143, 0.0
        %v1162 = vmax.f32 %v1144, 0.0
        %v1163 = vmax.f32 %v1145, 0.0
        %v1164 = vmax.f32 %v1146, 0.0
        %v1165 = vmax.f32 %v1147, 0.0
        %v1166 = vmax.f32 %v1148, 0.0
        %v1167 = vmax.f32 %v1149, 0.0
        %v1168 = vmax.f32 %v1150, 0.0
        %v1169 = vmax.f32 %v1151, 0.0
        %v1170 = vpack.c.bf16 %v1152, %v1152
        %v1171 = vpack.c.bf16 %v1153, %v1153
        %v1172 = vpack.c.bf16 %v1154, %v1154
        %v1173 = vpack.c.bf16 %v1155, %v1155
        %v1174 = vpack.c.bf16 %v1156, %v1156
        %v1175 = vpack.c.bf16 %v1157, %v1157
        %v1176 = vpack.c.bf16 %v1158, %v1158
        %v1177 = vpack.c.bf16 %v1159, %v1159
        %v1178 = vpack.c.bf16 %v1160, %v1160
        %v1179 = vpack.c.bf16 %v1161, %v1161
        %v1180 = vpack.c.bf16 %v1162, %v1162
        %v1181 = vpack.c.bf16 %v1163, %v1163
        %v1182 = vpack.c.bf16 %v1164, %v1164
        %v1183 = vpack.c.bf16 %v1165, %v1165
        %v1184 = vpack.c.bf16 %v1166, %v1166
        %v1185 = vpack.c.bf16 %v1167, %v1167
        %v1186 = vpack.c.bf16 %v1168, %v1168
        %v1187 = vpack.c.bf16 %v1169, %v1169
        %1188 = vst [vmem:[%s499] sm:$0xf] %v1170
        %1189 = vst [vmem:[%s499 + $0x4] sm:$0xf] %v1171
        %1190 = vst [vmem:[%s499 + $0x8] sm:$0xf] %v1172
        %1191 = vst [vmem:[%s499 + $0xc] sm:$0xf] %v1173
        %1192 = vst [vmem:[%s499 + $0x10] sm:$0xf] %v1174
        %1193 = vst [vmem:[%s499 + $0x14] sm:$0xf] %v1175
        %1194 = vst [vmem:[%s499 + $0x18] sm:$0xf] %v1176
        %1195 = vst [vmem:[%s499 + $0x1c] sm:$0xf] %v1177
        %1196 = vst [vmem:[%s499 + $0x20] sm:$0xf] %v1178
        %1197 = vst [vmem:[%s499 + $0x24] sm:$0xf] %v1179
        %1198 = vst [vmem:[%s499 + $0x28] sm:$0xf] %v1180
        %1199 = vst [vmem:[%s499 + $0x2c] sm:$0xf] %v1181
        %1200 = vst [vmem:[%s499 + $0x30] sm:$0xf] %v1182
        %1201 = vst [vmem:[%s499 + $0x34] sm:$0xf] %v1183
        %1202 = vst [vmem:[%s499 + $0x38] sm:$0xf] %v1184
        %1203 = vst [vmem:[%s499 + $0x3c] sm:$0xf] %v1185
        %1204 = vst [vmem:[%s499 + $0x40] sm:$0xf] %v1186
        %1205 = vst [vmem:[%s499 + $0x44] sm:$0xf] %v1187
        %s1206 = smul.u32 18, %s14
        %p1207 = scmp.lt.s32.totalorder %s1206, 35
        %s1208 = scalar_select %p1207, %s1206, 35
        %s1209 = smul.addr %s1208, 4
        %s1210 = scalar_lea.vmem %s3, %s1209
        // Predicated region
        $region74: #{_lambda_.4} parent=68 // pred_check
          %p1211 = pneg %p100
        $region75: #{_lambda_.4} parent=68 // pred_check_branch
          %1213 = sbr.rel (%p1211) target = $region77
        $region76: #{_lambda_.4} parent=68 // pred_region
          %s1214 = smul.u32 18, %s14
        $region77: #{_lambda_.4} parent=68 // pred_fallthru
          _
      $region69: #{_lambda_.4} parent=5 // pred_fallthru
        _
      %p1215 = scmp.le.s32.totalorder 2, %s9
      // Predicated region
      $region78: #{_lambda_.4} parent=5 // pred_check
        %p1216 = pneg %p1215
      $region79: #{_lambda_.4} parent=5 // pred_check_branch
        %1218 = sbr.rel (%p1216) target = $region81
      $region80: #{_lambda_.4} parent=5 // pred_region
        %s1219 = ssub.s32 %s9, 2
        // Predicated region
        $region82: #{_lambda_.4} parent=80 // pred_check
          %p1220 = pneg %p106
        $region83: #{_lambda_.4} parent=80 // pred_check_branch
          %1222 = sbr.rel (%p1220) target = $region85
        $region84: #{_lambda_.4} parent=80 // pred_region
          %s1223 = smul.u32 18, %s15
          %p1224 = scmp.lt.s32.totalorder %s1223, 35
          %s1225 = scalar_select %p1224, %s1223, 35
          %s1226 = smul.addr %s1225, 4
          %s1227 = scalar_lea.vmem %s3, %s1226
        $region85: #{_lambda_.4} parent=80 // pred_fallthru
          _
      $region81: #{_lambda_.4} parent=5 // pred_fallthru
        _
    $region6: #{_lambda_.4} parent=1 // loop_footer
      %s13 = sadd.s32 1, %s9
    $region7: #{_lambda_.4} parent=1 // loop_footer_branch
      %8 = sbr.rel target = $region3
    $region8: #{_lambda_.4} parent=1 // loop_exit
      _

// kernel: _lambda_.5
$region0: #{_lambda_.5}
  #allocation0 [shape = 'u32[]', space=smem, size = 0x4, offset = 0x4, fixed_abs, tag = 'smem constant byte address 0x4 - core index']
  #allocation1 [shape = 'u32[72,128]{1,0:T(1,128)}', space=vmem, size = 0x9000, scoped, tag = 'internal scratch']
  %s0 = inlined_call_operand.vmem [shape: bf16[4,24,288], index: 0, kind: input, shape index: {}]
  %s1 = inlined_call_operand.vmem [shape: bf16[288,128], index: 1, kind: input, shape index: {}]
  %s2 = inlined_call_operand.vmem [shape: f32[1,128], index: 2, kind: input, shape index: {}]
  %s3 = inlined_call_operand.vmem [shape: bf16[24,128], index: 3, kind: output, shape index: {}]
  %s4 = sld [smem:[#allocation0]]
  $region129: #{_lambda_.5} parent=0
    _
  %s6 = ssub.s32 1, %s4
  %s7 = scalar_select 0, %s6, %s4
  $region1: #{_lambda_.5} parent=0
    #allocation2 [shape = 'u8[98304]{0}', space=vmem, size = 0x18000, scoped, tag = 'input window, operand 0']
    #allocation3 [shape = 'u8[8192]{0}', space=vmem, size = 0x2000, scoped, tag = 'output window, operand 0']
    loop: start=0, step=1, limit=4
    $region2: #{_lambda_.5} parent=1 // loop_pre_header
      _
    $region3: #{_lambda_.5} parent=1 // loop_header
      %s9 = sphi 0, %s13
      %p10 = scmp.ge.s32.totalorder %s9, 4
      %s19 = sphi 0, %s21
      %s22 = sphi 0, %s19
      %s23 = sphi 0, %s22
      %s39 = sphi 0, %s23
      %s43 = sphi 0, %s43
      %s45 = sphi 0, %s43
      %s46 = sphi 0, %s45
      %s60 = sphi 0, %s46
      %s64 = sphi 0, %s64
      %s66 = sphi 0, %s64
      %s67 = sphi 0, %s66
      %s81 = sphi 0, %s67
      %s87 = sphi 0, %s89
      %s90 = sphi 0, %s87
      %s91 = sphi 0, %s90
      %s107 = sphi 0, %s91
    $region4: #{_lambda_.5} parent=1 // loop_header_branch
      %12 = sbr.rel (%p10) target = $region8
    $region5: #{_lambda_.5} parent=1 // loop_body
      %s14 = ssub.s32 %s9, 1
      %s15 = ssub.s32 %s9, 2
      %s16 = sadd.s32 %s9, 1
      %s17 = ssub.s32 %s9, %s16
      %p18 = scmp.eq.s32.totalorder %s17, 0
      %s20 = sadd.s32 %s19, 1
      %s21 = scalar_select %p18, %s19, %s20
      %p24 = pneg %p18
      %p25 = scmp.eq.s32.totalorder %s9, 1
      %p26 = por %p24, %p25
      %p27 = scmp.ne.s32.totalorder %s19, %s22
      %p28 = scmp.eq.s32.totalorder %s9, 0
      %p29 = por %p27, %p28
      %p30 = scmp.ne.s32.totalorder %s19, %s22
      %p31 = scmp.eq.s32.totalorder %s14, 1
      %p32 = por %p30, %p31
      %p33 = scmp.ne.s32.totalorder %s22, %s23
      %p34 = scmp.eq.s32.totalorder %s14, 0
      %p35 = por %p33, %p34
      %p36 = scmp.ne.s32.totalorder %s22, %s23
      %p37 = scmp.eq.s32.totalorder %s15, 1
      %p38 = por %p36, %p37
      %p40 = scmp.ne.s32.totalorder %s23, %s39
      %p41 = scmp.eq.s32.totalorder %s15, 0
      %p42 = por %p40, %p41
      %s44 = sadd.s32 %s43, 1
      %p47 = scmp.eq.s32.totalorder %s9, 1
      %p48 = scmp.ne.s32.totalorder %s43, %s45
      %p49 = scmp.eq.s32.totalorder %s9, 0
      %p50 = por %p48, %p49
      %p51 = scmp.ne.s32.totalorder %s43, %s45
      %p52 = scmp.eq.s32.totalorder %s14, 1
      %p53 = por %p51, %p52
      %p54 = scmp.ne.s32.totalorder %s45, %s46
      %p55 = scmp.eq.s32.totalorder %s14, 0
      %p56 = por %p54, %p55
      %p57 = scmp.ne.s32.totalorder %s45, %s46
      %p58 = scmp.eq.s32.totalorder %s15, 1
      %p59 = por %p57, %p58
      %p61 = scmp.ne.s32.totalorder %s46, %s60
      %p62 = scmp.eq.s32.totalorder %s15, 0
      %p63 = por %p61, %p62
      %s65 = sadd.s32 %s64, 1
      %p68 = scmp.eq.s32.totalorder %s9, 1
      %p69 = scmp.ne.s32.totalorder %s64, %s66
      %p70 = scmp.eq.s32.totalorder %s9, 0
      %p71 = por %p69, %p70
      %p72 = scmp.ne.s32.totalorder %s64, %s66
      %p73 = scmp.eq.s32.totalorder %s14, 1
      %p74 = por %p72, %p73
      %p75 = scmp.ne.s32.totalorder %s66, %s67
      %p76 = scmp.eq.s32.totalorder %s14, 0
      %p77 = por %p75, %p76
      %p78 = scmp.ne.s32.totalorder %s66, %s67
      %p79 = scmp.eq.s32.totalorder %s15, 1
      %p80 = por %p78, %p79
      %p82 = scmp.ne.s32.totalorder %s67, %s81
      %p83 = scmp.eq.s32.totalorder %s15, 0
      %p84 = por %p82, %p83
      %s85 = ssub.s32 %s9, %s16
      %p86 = scmp.eq.s32.totalorder %s85, 0
      %s88 = sadd.s32 %s87, 1
      %s89 = scalar_select %p86, %s87, %s88
      %p92 = pneg %p86
      %p93 = scmp.eq.s32.totalorder %s9, 1
      %p94 = por %p92, %p93
      %p95 = scmp.ne.s32.totalorder %s87, %s90
      %p96 = scmp.eq.s32.totalorder %s9, 0
      %p97 = por %p95, %p96
      %p98 = scmp.ne.s32.totalorder %s87, %s90
      %p99 = scmp.eq.s32.totalorder %s14, 1
      %p100 = por %p98, %p99
      %p101 = scmp.ne.s32.totalorder %s90, %s91
      %p102 = scmp.eq.s32.totalorder %s14, 0
      %p103 = por %p101, %p102
      %p104 = scmp.ne.s32.totalorder %s90, %s91
      %p105 = scmp.eq.s32.totalorder %s15, 1
      %p106 = por %p104, %p105
      %p108 = scmp.ne.s32.totalorder %s91, %s107
      %p109 = scmp.eq.s32.totalorder %s15, 0
      %p110 = por %p108, %p109
      %p111 = scmp.le.s32.totalorder 1, %s9
      %p112 = scmp.lt.s32.totalorder %s9, 3
      %p113 = pnand %p111, %p112
      %p114 = pneg %p113
      // Predicated region
      $region9: #{_lambda_.5} parent=5 // pred_check
        _
      $region10: #{_lambda_.5} parent=5 // pred_check_branch
        %116 = sbr.rel (%p113) target = $region12
      $region11: #{_lambda_.5} parent=5 // pred_region
        %s117 = ssub.s32 %s9, 1
        // Predicated region
        $region13: #{_lambda_.5} parent=11 // pred_check
          %p118 = pneg %p56
        $region14: #{_lambda_.5} parent=11 // pred_check_branch
          %120 = sbr.rel (%p118) target = $region16
        $region15: #{_lambda_.5} parent=11 // pred_region
          _
        $region16: #{_lambda_.5} parent=11 // pred_fallthru
          _
        // Predicated region
        $region17: #{_lambda_.5} parent=11 // pred_check
          %p121 = pneg %p77
        $region18: #{_lambda_.5} parent=11 // pred_check_branch
          %123 = sbr.rel (%p121) target = $region20
        $region19: #{_lambda_.5} parent=11 // pred_region
          _
        $region20: #{_lambda_.5} parent=11 // pred_fallthru
          _
      $region12: #{_lambda_.5} parent=5 // pred_fallthru
        _
      %p124 = scmp.lt.s32.totalorder %s9, 2
      // Predicated region
      $region21: #{_lambda_.5} parent=5 // pred_check
        %p125 = pneg %p124
      $region22: #{_lambda_.5} parent=5 // pred_check_branch
        %127 = sbr.rel (%p125) target = $region24
      $region23: #{_lambda_.5} parent=5 // pred_region
        // Predicated region
        $region25: #{_lambda_.5} parent=23 // pred_check
          %p128 = pneg %p29
        $region26: #{_lambda_.5} parent=23 // pred_check_branch
          %130 = sbr.rel (%p128) target = $region28
        $region27: #{_lambda_.5} parent=23 // pred_region
          %s131 = sand.u32 %s19, 1
          %s132 = sand.u32 %s19, 1
          %s133 = smul.addr %s132, 96
          %s134 = scalar_lea.vmem [#allocation2], %s133
          %s135 = smul.u32 2, %s9
          %s136 = ssub.s32 3, %s135
          %p137 = scmp.lt.s32.totalorder %s136, 2
          %s138 = scalar_select %p137, %s136, 2
          %s139 = smul.u32 16, %s138
          %s140 = smul.u32 %s139, 3
          %p141 = scmp.ne.s32.totalorder 0, %s140
          %s142 = smul.addr %s135, 3
          %s143 = smul.addr %s142, 4
          %s144 = scalar_lea.vmem %s0, %s143
          // Predicated region
          $region29: #{_lambda_.5} parent=27 // pred_check
            %p145 = pneg %p141
          $region30: #{_lambda_.5} parent=27 // pred_check_branch
            %147 = sbr.rel (%p145) target = $region32
          $region31: #{_lambda_.5} parent=27 // pred_region
            // Predicated region
            $region33: #{_lambda_.5} parent=31 // pred_check
              _
            $region34: #{_lambda_.5} parent=31 // pred_check_branch
              %149 = sbr.rel (0) target = $region36
            $region35: #{_lambda_.5} parent=31 // pred_region
              %s150 = scalar_lea.vmem %s144, 8
              %s151 = scalar_lea.vmem %s134, 8 [#allocation2]
              %s152 = sshrl.u32 %s138, 1
              // While loop
              $region37: #{_lambda_.5} parent=35 // loop_pre_header
                _
              $region38: #{_lambda_.5} parent=35 // loop_header
                %s154 = sphi 0, %s156
                %p155 = scmp.ge.s32.totalorder %s154, %s152
                %s159 = sphi 0, %s180
                %s160 = sphi %s144, %s183
                %s161 = sphi %s134, %s184
              $region39: #{_lambda_.5} parent=35 // loop_header_branch
                %158 = sbr.rel (%p155) target = $region43
              $region40: #{_lambda_.5} parent=35 // loop_body
                %v162 = vld [vmem:[%s160] sm:$0xff]
                %163 = vst [vmem:[%s161] sm:$0xff] %v162
                %v164 = vld [vmem:[%s160 + $0xc] sm:$0xff]
                %165 = vst [vmem:[%s161 + $0xc] sm:$0xff] %v164
                %v166 = vld [vmem:[%s160 + $0x24] sm:$0xff]
                %167 = vst [vmem:[%s161 + $0x18] sm:$0xff] %v166
                %v168 = vld [vmem:[%s160 + $0x30] sm:$0xff]
                %169 = vst [vmem:[%s161 + $0x24] sm:$0xff] %v168
                %v170 = vld [vmem:[%s160 + $0x48] sm:$0xff]
                %171 = vst [vmem:[%s161 + $0x30] sm:$0xff] %v170
                %v172 = vld [vmem:[%s160 + $0x54] sm:$0xff]
                %173 = vst [vmem:[%s161 + $0x3c] sm:$0xff] %v172
                %v174 = vld [vmem:[%s160 + $0x6c] sm:$0xff]
                %175 = vst [vmem:[%s161 + $0x48] sm:$0xff] %v174
                %v176 = vld [vmem:[%s160 + $0x78] sm:$0xff]
                %177 = vst [vmem:[%s161 + $0x54] sm:$0xff] %v176
                %s178 = sadd.s32 1, %s159
                %p179 = scmp.ge.s32.totalorder %s178, %s152
                %s180 = scalar_select %p179, 0, %s178
                %s181 = smul.u32 %s180, 24
                %s182 = smul.u32 %s180, 24
                %s183 = scalar_lea.vmem %s144, %s181
                %s184 = scalar_lea.vmem %s134, %s182 [#allocation2]
              $region41: #{_lambda_.5} parent=35 // loop_footer
                %s156 = sadd.s32 %s154, 1
              $region42: #{_lambda_.5} parent=35 // loop_footer_branch
                %153 = sbr.rel target = $region38
              $region43: #{_lambda_.5} parent=35 // loop_exit
                _
              %s185 = sshrl.u32 %s138, 1
              %s186 = sand.u32 %s138, 1
              %s187 = smul.u32 %s185, 2
              %s188 = smul.u32 12, %s187
              %s189 = scalar_lea.vmem %s144, %s188
              %s190 = smul.u32 12, %s187
              %s191 = scalar_lea.vmem %s134, %s190 [#allocation2]
              // While loop
              $region44: #{_lambda_.5} parent=35 // loop_pre_header
                _
              $region45: #{_lambda_.5} parent=35 // loop_header
                %s193 = sphi 0, %s195
                %p194 = scmp.ge.s32.totalorder %s193, %s186
                %s198 = sphi 0, %s211
                %s199 = sphi %s189, %s214
                %s200 = sphi %s191, %s215
              $region46: #{_lambda_.5} parent=35 // loop_header_branch
                %197 = sbr.rel (%p194) target = $region50
              $region47: #{_lambda_.5} parent=35 // loop_body
                %v201 = vld [vmem:[%s199] sm:$0xff]
                %202 = vst [vmem:[%s200] sm:$0xff] %v201
                %v203 = vld [vmem:[%s199 + $0x24] sm:$0xff]
                %204 = vst [vmem:[%s200 + $0x18] sm:$0xff] %v203
                %v205 = vld [vmem:[%s199 + $0x48] sm:$0xff]
                %206 = vst [vmem:[%s200 + $0x30] sm:$0xff] %v205
                %v207 = vld [vmem:[%s199 + $0x6c] sm:$0xff]
                %208 = vst [vmem:[%s200 + $0x48] sm:$0xff] %v207
                %s209 = sadd.s32 1, %s198
                %p210 = scmp.ge.s32.totalorder %s209, %s186
                %s211 = scalar_select %p210, 0, %s209
                %s212 = smul.u32 %s211, 12
                %s213 = smul.u32 %s211, 12
                %s214 = scalar_lea.vmem %s189, %s212
                %s215 = scalar_lea.vmem %s191, %s213 [#allocation2]
              $region48: #{_lambda_.5} parent=35 // loop_footer
                %s195 = sadd.s32 %s193, 1
              $region49: #{_lambda_.5} parent=35 // loop_footer_branch
                %192 = sbr.rel target = $region45
              $region50: #{_lambda_.5} parent=35 // loop_exit
                _
              %s217 = ssub.s32 16, 1
              %s218 = sshrl.u32 %s138, 1
              // While loop
              $region51: #{_lambda_.5} parent=35 // loop_pre_header
                _
              $region52: #{_lambda_.5} parent=35 // loop_header
                %s220 = sphi 0, %s222
                %p221 = scmp.ge.s32.totalorder %s220, %s218
                %s225 = sphi 0, %s246
                %s226 = sphi %s150, %s249
                %s227 = sphi %s151, %s250
              $region53: #{_lambda_.5} parent=35 // loop_header_branch
                %224 = sbr.rel (%p221) target = $region57
              $region54: #{_lambda_.5} parent=35 // loop_body
                %v228 = vld [vmem:[%s226] sm:%s217]
                %229 = vst [vmem:[%s227] sm:%s217] %v228
                %v230 = vld [vmem:[%s226 + $0xc] sm:%s217]
                %231 = vst [vmem:[%s227 + $0xc] sm:%s217] %v230
                %v232 = vld [vmem:[%s226 + $0x24] sm:%s217]
                %233 = vst [vmem:[%s227 + $0x18] sm:%s217] %v232
                %v234 = vld [vmem:[%s226 + $0x30] sm:%s217]
                %235 = vst [vmem:[%s227 + $0x24] sm:%s217] %v234
                %v236 = vld [vmem:[%s226 + $0x48] sm:%s217]
                %237 = vst [vmem:[%s227 + $0x30] sm:%s217] %v236
                %v238 = vld [vmem:[%s226 + $0x54] sm:%s217]
                %239 = vst [vmem:[%s227 + $0x3c] sm:%s217] %v238
                %v240 = vld [vmem:[%s226 + $0x6c] sm:%s217]
                %241 = vst [vmem:[%s227 + $0x48] sm:%s217] %v240
                %v242 = vld [vmem:[%s226 + $0x78] sm:%s217]
                %243 = vst [vmem:[%s227 + $0x54] sm:%s217] %v242
                %s244 = sadd.s32 1, %s225
                %p245 = scmp.ge.s32.totalorder %s244, %s218
                %s246 = scalar_select %p245, 0, %s244
                %s247 = smul.u32 %s246, 24
                %s248 = smul.u32 %s246, 24
                %s249 = scalar_lea.vmem %s150, %s247
                %s250 = scalar_lea.vmem %s151, %s248 [#allocation2]
              $region55: #{_lambda_.5} parent=35 // loop_footer
                %s222 = sadd.s32 %s220, 1
              $region56: #{_lambda_.5} parent=35 // loop_footer_branch
                %219 = sbr.rel target = $region52
              $region57: #{_lambda_.5} parent=35 // loop_exit
                _
              %s251 = sshrl.u32 %s138, 1
              %s252 = sand.u32 %s138, 1
              %s253 = smul.u32 %s251, 2
              %s254 = smul.u32 12, %s253
              %s255 = scalar_lea.vmem %s150, %s254
              %s256 = smul.u32 12, %s253
              %s257 = scalar_lea.vmem %s151, %s256 [#allocation2]
              // While loop
              $region58: #{_lambda_.5} parent=35 // loop_pre_header
                _
              $region59: #{_lambda_.5} parent=35 // loop_header
                %s259 = sphi 0, %s261
                %p260 = scmp.ge.s32.totalorder %s259, %s252
                %s264 = sphi 0, %s277
                %s265 = sphi %s255, %s280
                %s266 = sphi %s257, %s281
              $region60: #{_lambda_.5} parent=35 // loop_header_branch
                %263 = sbr.rel (%p260) target = $region64
              $region61: #{_lambda_.5} parent=35 // loop_body
                %v267 = vld [vmem:[%s265] sm:%s217]
                %268 = vst [vmem:[%s266] sm:%s217] %v267
                %v269 = vld [vmem:[%s265 + $0x24] sm:%s217]
                %270 = vst [vmem:[%s266 + $0x18] sm:%s217] %v269
                %v271 = vld [vmem:[%s265 + $0x48] sm:%s217]
                %272 = vst [vmem:[%s266 + $0x30] sm:%s217] %v271
                %v273 = vld [vmem:[%s265 + $0x6c] sm:%s217]
                %274 = vst [vmem:[%s266 + $0x48] sm:%s217] %v273
                %s275 = sadd.s32 1, %s264
                %p276 = scmp.ge.s32.totalorder %s275, %s252
                %s277 = scalar_select %p276, 0, %s275
                %s278 = smul.u32 %s277, 12
                %s279 = smul.u32 %s277, 12
                %s280 = scalar_lea.vmem %s255, %s278
                %s281 = scalar_lea.vmem %s257, %s279 [#allocation2]
              $region62: #{_lambda_.5} parent=35 // loop_footer
                %s261 = sadd.s32 %s259, 1
              $region63: #{_lambda_.5} parent=35 // loop_footer_branch
                %258 = sbr.rel target = $region59
              $region64: #{_lambda_.5} parent=35 // loop_exit
                _
            $region36: #{_lambda_.5} parent=31 // pred_fallthru
              _
          $region32: #{_lambda_.5} parent=27 // pred_fallthru
            _
          %282 = vnop
        $region28: #{_lambda_.5} parent=23 // pred_fallthru
          _
      $region24: #{_lambda_.5} parent=5 // pred_fallthru
        _
      %p283 = scmp.le.s32.totalorder 1, %s9
      %p284 = scmp.lt.s32.totalorder %s9, 3
      %p285 = pnand %p283, %p284
      %p286 = pneg %p285
      // Predicated region
      $region65: #{_lambda_.5} parent=5 // pred_check
        _
      $region66: #{_lambda_.5} parent=5 // pred_check_branch
        %288 = sbr.rel (%p285) target = $region68
      $region67: #{_lambda_.5} parent=5 // pred_region
        %s289 = ssub.s32 %s9, 1
        %s290 = sand.u32 %s22, 1
        %s291 = sand.u32 %s22, 1
        %s292 = smul.addr %s291, 96
        %s293 = scalar_lea.vmem [#allocation2], %s292
        // Predicated region
        $region69: #{_lambda_.5} parent=67 // pred_check
          %p294 = pneg %p35
        $region70: #{_lambda_.5} parent=67 // pred_check_branch
          %296 = sbr.rel (%p294) target = $region72
        $region71: #{_lambda_.5} parent=67 // pred_region
          _
        $region72: #{_lambda_.5} parent=67 // pred_fallthru
          _
        %s297 = sand.u32 %s22, 1
        %s298 = sand.u32 %s22, 1
        %s299 = smul.addr %s298, 96
        %s300 = scalar_lea.vmem [#allocation2], %s299
        %p301 = pneg %p35
        %p302 = pneg %p32
        %p303 = pneg %p56
        %p304 = pneg %p53
        %p305 = pneg %p77
        %p306 = pneg %p74
        %p307 = pneg %p103
        %p308 = pneg %p100
        %s309 = sand.u32 %s90, 1
        %s310 = sand.u32 %s90, 1
        %s311 = smul.addr %s310, 8
        %s312 = scalar_lea.vmem [#allocation3], %s311
        %s313 = smul.u32 2, %s14
        %s314 = ssub.s32 3, %s313
        %p315 = scmp.lt.s32.totalorder %s314, 2
        %s316 = scalar_select %p315, %s314, 2
        %s317 = smul.u32 16, %s316
        %s318 = smul.u32 %s317, 3
        %s319 = smul.u32 2, %s14
        %s320 = ssub.s32 3, %s319
        %p321 = scmp.lt.s32.totalorder %s320, 2
        %s322 = scalar_select %p321, %s320, 2
        %s323 = smul.u32 4, %s322
        %v325 = vld [vmem:[%s293] sm:$0xff]
        %v326 = vld [vmem:[%s293 + $0x8] sm:$0xf]
        %v327 = vld [vmem:[%s293 + $0xc] sm:$0xff]
        %v328 = vld [vmem:[%s293 + $0x14] sm:$0xf]
        %v329 = vld [vmem:[%s293 + $0x18] sm:$0xff]
        %v330 = vld [vmem:[%s293 + $0x20] sm:$0xf]
        %v331 = vld [vmem:[%s293 + $0x24] sm:$0xff]
        %v332 = vld [vmem:[%s293 + $0x2c] sm:$0xf]
        %v333 = vld [vmem:[%s293 + $0x30] sm:$0xff]
        %v334 = vld [vmem:[%s293 + $0x38] sm:$0xf]
        %v335 = vld [vmem:[%s293 + $0x3c] sm:$0xff]
        %v336 = vld [vmem:[%s293 + $0x44] sm:$0xf]
        %v337 = vld [vmem:[%s293 + $0x48] sm:$0xff]
        %v338 = vld [vmem:[%s293 + $0x50] sm:$0xf]
        %v339 = vld [vmem:[%s293 + $0x54] sm:$0xff]
        %v340 = vld [vmem:[%s293 + $0x5c] sm:$0xf]
        %v341 = vld [vmem:[%s1] sm:$0xf]
        %v342 = vld [vmem:[%s1 + $0x4] sm:$0xf]
        %v343 = vld [vmem:[%s1 + $0x8] sm:$0xf]
        %v344 = vld [vmem:[%s1 + $0xc] sm:$0xf]
        %v345 = vld [vmem:[%s1 + $0x10] sm:$0xf]
        %v346 = vld [vmem:[%s1 + $0x14] sm:$0xf]
        %v347 = vld [vmem:[%s1 + $0x18] sm:$0xf]
        %v348 = vld [vmem:[%s1 + $0x1c] sm:$0xf]
        %v349 = vld [vmem:[%s1 + $0x20] sm:$0xf]
        %v350 = vld [vmem:[%s1 + $0x24] sm:$0xf]
        %v351 = vld [vmem:[%s1 + $0x28] sm:$0xf]
        %v352 = vld [vmem:[%s1 + $0x2c] sm:$0xf]
        %v353 = vld [vmem:[%s1 + $0x30] sm:$0xf]
        %v354 = vld [vmem:[%s1 + $0x34] sm:$0xf]
        %v355 = vld [vmem:[%s1 + $0x38] sm:$0xf]
        %v356 = vld [vmem:[%s1 + $0x3c] sm:$0xf]
        %v357 = vld [vmem:[%s1 + $0x40] sm:$0xf]
        %v358 = vld [vmem:[%s1 + $0x44] sm:$0xf]
        %v359 = vld [vmem:[%s1 + $0x48] sm:$0xf]
        %v360 = vld [vmem:[%s1 + $0x4c] sm:$0xf]
        %v361 = vld [vmem:[%s1 + $0x50] sm:$0xf]
        %v362 = vld [vmem:[%s1 + $0x54] sm:$0xf]
        %v363 = vld [vmem:[%s1 + $0x58] sm:$0xf]
        %v364 = vld [vmem:[%s1 + $0x5c] sm:$0xf]
        %v365 = vld [vmem:[%s1 + $0x60] sm:$0xf]
        %v366 = vld [vmem:[%s1 + $0x64] sm:$0xf]
        %v367 = vld [vmem:[%s1 + $0x68] sm:$0xf]
        %v368 = vld [vmem:[%s1 + $0x6c] sm:$0xf]
        %v369 = vld [vmem:[%s1 + $0x70] sm:$0xf]
        %v370 = vld [vmem:[%s1 + $0x74] sm:$0xf]
        %v371 = vld [vmem:[%s1 + $0x78] sm:$0xf]
        %v372 = vld [vmem:[%s1 + $0x7c] sm:$0xf]
        %v373 = vld [vmem:[%s1 + $0x80] sm:$0xf]
        %v374 = vld [vmem:[%s1 + $0x84] sm:$0xf]
        %v375 = vld [vmem:[%s1 + $0x88] sm:$0xf]
        %v376 = vld [vmem:[%s1 + $0x8c] sm:$0xf]
        %v393 = vunpack.c.l.b16 %v325
        %v394 = vunpack.c.h.b16 %v325
        %v395 = vunpack.c.l.b16 %v326
        %v396 = vunpack.c.l.b16 %v327
        %v397 = vunpack.c.h.b16 %v327
        %v398 = vunpack.c.l.b16 %v328
        %v399 = vunpack.c.l.b16 %v329
        %v400 = vunpack.c.h.b16 %v329
        %v401 = vunpack.c.l.b16 %v330
        %v402 = vunpack.c.l.b16 %v331
        %v403 = vunpack.c.h.b16 %v331
        %v404 = vunpack.c.l.b16 %v332
        %v405 = vunpack.c.l.b16 %v333
        %v406 = vunpack.c.h.b16 %v333
        %v407 = vunpack.c.l.b16 %v334
        %v408 = vunpack.c.l.b16 %v335
        %v409 = vunpack.c.h.b16 %v335
        %v410 = vunpack.c.l.b16 %v336
        %v411 = vunpack.c.l.b16 %v337
        %v412 = vunpack.c.h.b16 %v337
        %v413 = vunpack.c.l.b16 %v338
        %v414 = vunpack.c.l.b16 %v339
        %v415 = vunpack.c.h.b16 %v339
        %v416 = vunpack.c.l.b16 %v340
        %v417 = vpack.c.b16 %v396, %v393
        %v418 = vpack.c.b16 %v397, %v394
        %v419 = vpack.c.b16 %v398, %v395
        %v420 = vpack.c.b16 %v402, %v399
        %v421 = vpack.c.b16 %v403, %v400
        %v422 = vpack.c.b16 %v404, %v401
        %v423 = vpack.c.b16 %v408, %v405
        %v424 = vpack.c.b16 %v409, %v406
        %v425 = vpack.c.b16 %v410, %v407
        %v426 = vpack.c.b16 %v414, %v411
        %v427 = vpack.c.b16 %v415, %v412
        %v428 = vpack.c.b16 %v416, %v413
        %v473 = vunpack.c.l.b16 %v341
        %v474 = vunpack.c.l.b16 %v342
        %v475 = vunpack.c.l.b16 %v343
        %v476 = vunpack.c.l.b16 %v344
        %v477 = vunpack.c.l.b16 %v345
        %v478 = vunpack.c.l.b16 %v346
        %v479 = vunpack.c.l.b16 %v347
        %v480 = vunpack.c.l.b16 %v348
        %v481 = vunpack.c.l.b16 %v349
        %v482 = vunpack.c.l.b16 %v350
        %v483 = vunpack.c.l.b16 %v351
        %v484 = vunpack.c.l.b16 %v352
        %v485 = vunpack.c.l.b16 %v353
        %v486 = vunpack.c.l.b16 %v354
        %v487 = vunpack.c.l.b16 %v355
        %v488 = vunpack.c.l.b16 %v356
        %v489 = vunpack.c.l.b16 %v357
        %v490 = vunpack.c.l.b16 %v358
        %v491 = vunpack.c.l.b16 %v359
        %v492 = vunpack.c.l.b16 %v360
        %v493 = vunpack.c.l.b16 %v361
        %v494 = vunpack.c.l.b16 %v362
        %v495 = vunpack.c.l.b16 %v363
        %v496 = vunpack.c.l.b16 %v364
        %v497 = vunpack.c.l.b16 %v365
        %v498 = vunpack.c.l.b16 %v366
        %v499 = vunpack.c.l.b16 %v367
        %v500 = vunpack.c.l.b16 %v368
        %v501 = vunpack.c.l.b16 %v369
        %v502 = vunpack.c.l.b16 %v370
        %v503 = vunpack.c.l.b16 %v371
        %v504 = vunpack.c.l.b16 %v372
        %v505 = vunpack.c.l.b16 %v373
        %v506 = vunpack.c.l.b16 %v374
        %v507 = vunpack.c.l.b16 %v375
        %v508 = vunpack.c.l.b16 %v376
        %v509 = vpack.c.b16 %v474, %v473
        %v510 = vpack.c.b16 %v476, %v475
        %v511 = vpack.c.b16 %v478, %v477
        %v512 = vpack.c.b16 %v480, %v479
        %v513 = vpack.c.b16 %v482, %v481
        %v514 = vpack.c.b16 %v484, %v483
        %v515 = vpack.c.b16 %v486, %v485
        %v516 = vpack.c.b16 %v488, %v487
        %v517 = vpack.c.b16 %v490, %v489
        %v518 = vpack.c.b16 %v492, %v491
        %v519 = vpack.c.b16 %v494, %v493
        %v520 = vpack.c.b16 %v496, %v495
        %v521 = vpack.c.b16 %v498, %v497
        %v522 = vpack.c.b16 %v500, %v499
        %v523 = vpack.c.b16 %v502, %v501
        %v524 = vpack.c.b16 %v504, %v503
        %v525 = vpack.c.b16 %v506, %v505
        %v526 = vpack.c.b16 %v508, %v507
        %vm545 = vcmask 261120
        %v547 = vsel %vm545, %v419, 0
        %v550 = vsel %vm545, %v422, 0
        %v553 = vsel %vm545, %v425, 0
        %v556 = vsel %vm545, %v428, 0
        %558 = vmatpush.bf16.msra.mxu0 %v516
        %559 = vmatpush.bf16.msra.mxu0 %v515
        %560 = vmatpush.bf16.msra.mxu0 %v514
        %561 = vmatpush.bf16.msra.mxu0 %v513
        %562 = vmatpush.bf16.msra.mxu0 %v512
        %563 = vmatpush.bf16.msra.mxu0 %v511
        %564 = vmatpush.bf16.msra.mxu0 %v510
        %565 = vmatpush.bf16.msra.mxu0 %v509
        %566 = vmatmul.bf16.gmra.mxu0 %v417
        %v567 = vpop.f32.mrf.mxu0
        %v568 = vadd.f32 0.0, %v567
        %v569 = vpop.f32.mrf.mxu0
        %v570 = vadd.f32 0.0, %v569
        %571 = vmatmul.bf16.gmra.mxu0 %v420
        %v572 = vpop.f32.mrf.mxu0
        %v573 = vadd.f32 0.0, %v572
        %v574 = vpop.f32.mrf.mxu0
        %v575 = vadd.f32 0.0, %v574
        %576 = vmatmul.bf16.gmra.mxu0 %v423
        %v577 = vpop.f32.mrf.mxu0
        %v578 = vadd.f32 0.0, %v577
        %v579 = vpop.f32.mrf.mxu0
        %v580 = vadd.f32 0.0, %v579
        %581 = vmatmul.bf16.gmra.mxu0 %v426
        %v582 = vpop.f32.mrf.mxu0
        %v583 = vadd.f32 0.0, %v582
        %v584 = vpop.f32.mrf.mxu0
        %v585 = vadd.f32 0.0, %v584
        %586 = vdwg.mxu0
        %587 = vmatpush.bf16.msra.mxu0 %v524
        %588 = vmatpush.bf16.msra.mxu0 %v523
        %589 = vmatpush.bf16.msra.mxu0 %v522
        %590 = vmatpush.bf16.msra.mxu0 %v521
        %591 = vmatpush.bf16.msra.mxu0 %v520
        %592 = vmatpush.bf16.msra.mxu0 %v519
        %593 = vmatpush.bf16.msra.mxu0 %v518
        %594 = vmatpush.bf16.msra.mxu0 %v517
        %595 = vmatmul.bf16.gmra.mxu0 %v418
        %v596 = vpop.f32.mrf.mxu0
        %v597 = vadd.f32 %v568, %v596
        %v598 = vpop.f32.mrf.mxu0
        %v599 = vadd.f32 %v570, %v598
        %600 = vmatmul.bf16.gmra.mxu0 %v421
        %v601 = vpop.f32.mrf.mxu0
        %v602 = vadd.f32 %v573, %v601
        %v603 = vpop.f32.mrf.mxu0
        %v604 = vadd.f32 %v575, %v603
        %605 = vmatmul.bf16.gmra.mxu0 %v424
        %v606 = vpop.f32.mrf.mxu0
        %v607 = vadd.f32 %v578, %v606
        %v608 = vpop.f32.mrf.mxu0
        %v609 = vadd.f32 %v580, %v608
        %610 = vmatmul.bf16.gmra.mxu0 %v427
        %v611 = vpop.f32.mrf.mxu0
        %v612 = vadd.f32 %v583, %v611
        %v613 = vpop.f32.mrf.mxu0
        %v614 = vadd.f32 %v585, %v613
        %615 = vdwg.mxu0
        %616 = vmatpush.bf16.msra.mxu0 0
        %617 = vmatpush.bf16.msra.mxu0 0
        %618 = vmatpush.bf16.msra.mxu0 0
        %619 = vmatpush.bf16.msra.mxu0 0
        %620 = vmatpush.bf16.msra.mxu0 0
        %621 = vmatpush.bf16.msra.mxu0 0
        %622 = vmatpush.bf16.msra.mxu0 %v526
        %623 = vmatpush.bf16.msra.mxu0 %v525
        %624 = vmatmul.bf16.gmra.mxu0 %v547
        %v625 = vpop.f32.mrf.mxu0
        %v626 = vadd.f32 %v597, %v625
        %v627 = vpop.f32.mrf.mxu0
        %v628 = vadd.f32 %v599, %v627
        %629 = vmatmul.bf16.gmra.mxu0 %v550
        %v630 = vpop.f32.mrf.mxu0
        %v631 = vadd.f32 %v602, %v630
        %v632 = vpop.f32.mrf.mxu0
        %v633 = vadd.f32 %v604, %v632
        %634 = vmatmul.bf16.gmra.mxu0 %v553
        %v635 = vpop.f32.mrf.mxu0
        %v636 = vadd.f32 %v607, %v635
        %v637 = vpop.f32.mrf.mxu0
        %v638 = vadd.f32 %v609, %v637
        %639 = vmatmul.bf16.gmra.mxu0 %v556
        %v640 = vpop.f32.mrf.mxu0
        %v641 = vadd.f32 %v612, %v640
        %v642 = vpop.f32.mrf.mxu0
        %v643 = vadd.f32 %v614, %v642
        %644 = vdwg.mxu0
        %v645 = vmax.f32 %v626, %v631
        %v646 = vmax.f32 %v628, %v633
        %v647 = vmax.f32 %v636, %v641
        %v648 = vmax.f32 %v638, %v643
        %v649 = vmax.f32 %v645, %v647
        %v650 = vmax.f32 %v646, %v648
        %v651 = vld [vmem:[%s2] sm:$0x1]
        %v653 = vperm.slane %v651, 0
        %v655 = vadd.f32 %v649, %v653
        %v656 = vadd.f32 %v650, %v653
        %v657 = vmax.f32 %v655, 0.0
        %v658 = vmax.f32 %v656, 0.0
        %v659 = vpack.c.bf16 %v657, %v657
        %v660 = vpack.c.bf16 %v658, %v658
        %661 = vst [vmem:[%s312] sm:$0xf] %v659
        %662 = vst [vmem:[%s312 + $0x4] sm:$0xf] %v660
        %s663 = sand.u32 %s90, 1
        %s664 = sand.u32 %s90, 1
        %s665 = smul.addr %s664, 8
        %s666 = scalar_lea.vmem [#allocation3], %s665
        // Predicated region
        $region73: #{_lambda_.5} parent=67 // pred_check
          %p667 = pneg %p100
        $region74: #{_lambda_.5} parent=67 // pred_check_branch
          %669 = sbr.rel (%p667) target = $region76
        $region75: #{_lambda_.5} parent=67 // pred_region
          %s670 = smul.u32 2, %s14
          %s671 = ssub.s32 3, %s670
          %p672 = scmp.lt.s32.totalorder %s671, 2
          %s673 = scalar_select %p672, %s671, 2
          %s674 = smul.u32 4, %s673
          %p675 = scmp.ne.s32.totalorder 0, %s674
          %s676 = smul.addr %s670, 4
          %s677 = scalar_lea.vmem %s3, %s676
          // Predicated region
          $region77: #{_lambda_.5} parent=75 // pred_check
            %p678 = pneg %p675
          $region78: #{_lambda_.5} parent=75 // pred_check_branch
            %680 = sbr.rel (%p678) target = $region80
          $region79: #{_lambda_.5} parent=75 // pred_region
            // Predicated region
            $region81: #{_lambda_.5} parent=79 // pred_check
              _
            $region82: #{_lambda_.5} parent=79 // pred_check_branch
              %682 = sbr.rel target = $region84
            $region83: #{_lambda_.5} parent=79 // pred_region
              // Predicated region
              $region103: #{_lambda_.5} parent=83 // pred_check
                _
              $region104: #{_lambda_.5} parent=83 // pred_check_branch
                %734 = sbr.rel (0) target = $region106
              $region105: #{_lambda_.5} parent=83 // pred_region
                %s736 = ssub.s32 16, 1
                %s737 = sshrl.u32 %s673, 1
                // While loop
                $region107: #{_lambda_.5} parent=105 // loop_pre_header
                  _
                $region108: #{_lambda_.5} parent=105 // loop_header
                  %s739 = sphi 0, %s741
                  %p740 = scmp.ge.s32.totalorder %s739, %s737
                  %s744 = sphi 0, %s753
                  %s745 = sphi %s666, %s756
                  %s746 = sphi %s677, %s757
                $region109: #{_lambda_.5} parent=105 // loop_header_branch
                  %743 = sbr.rel (%p740) target = $region113
                $region110: #{_lambda_.5} parent=105 // loop_body
                  %v747 = vld [vmem:[%s745] sm:%s736]
                  %748 = vst [vmem:[%s746] sm:%s736] %v747
                  %v749 = vld [vmem:[%s745 + $0x4] sm:%s736]
                  %750 = vst [vmem:[%s746 + $0x4] sm:%s736] %v749
                  %s751 = sadd.s32 1, %s744
                  %p752 = scmp.ge.s32.totalorder %s751, %s737
                  %s753 = scalar_select %p752, 0, %s751
                  %s754 = smul.u32 %s753, 8
                  %s755 = smul.u32 %s753, 8
                  %s756 = scalar_lea.vmem %s666, %s754 [#allocation3]
                  %s757 = scalar_lea.vmem %s677, %s755
                $region111: #{_lambda_.5} parent=105 // loop_footer
                  %s741 = sadd.s32 %s739, 1
                $region112: #{_lambda_.5} parent=105 // loop_footer_branch
                  %738 = sbr.rel target = $region108
                $region113: #{_lambda_.5} parent=105 // loop_exit
                  _
                %s758 = sshrl.u32 %s673, 1
                %s759 = sand.u32 %s673, 1
                %s760 = smul.u32 %s758, 2
                %s761 = smul.u32 4, %s760
                %s762 = scalar_lea.vmem %s666, %s761 [#allocation3]
                %s763 = smul.u32 4, %s760
                %s764 = scalar_lea.vmem %s677, %s763
                // While loop
                $region114: #{_lambda_.5} parent=105 // loop_pre_header
                  _
                $region115: #{_lambda_.5} parent=105 // loop_header
                  %s766 = sphi 0, %s768
                  %p767 = scmp.ge.s32.totalorder %s766, %s759
                  %s771 = sphi 0, %s778
                  %s772 = sphi %s762, %s781
                  %s773 = sphi %s764, %s782
                $region116: #{_lambda_.5} parent=105 // loop_header_branch
                  %770 = sbr.rel (%p767) target = $region120
                $region117: #{_lambda_.5} parent=105 // loop_body
                  %v774 = vld [vmem:[%s772] sm:%s736]
                  %775 = vst [vmem:[%s773] sm:%s736] %v774
                  %s776 = sadd.s32 1, %s771
                  %p777 = scmp.ge.s32.totalorder %s776, %s759
                  %s778 = scalar_select %p777, 0, %s776
                  %s779 = smul.u32 %s778, 4
                  %s780 = smul.u32 %s778, 4
                  %s781 = scalar_lea.vmem %s762, %s779 [#allocation3]
                  %s782 = scalar_lea.vmem %s764, %s780
                $region118: #{_lambda_.5} parent=105 // loop_footer
                  %s768 = sadd.s32 %s766, 1
                $region119: #{_lambda_.5} parent=105 // loop_footer_branch
                  %765 = sbr.rel target = $region115
                $region120: #{_lambda_.5} parent=105 // loop_exit
                  _
              $region106: #{_lambda_.5} parent=83 // pred_fallthru
                _
            $region84: #{_lambda_.5} parent=79 // pred_fallthru
              _
            // Predicated region
            $region85: #{_lambda_.5} parent=79 // pred_check
              _
            $region86: #{_lambda_.5} parent=79 // pred_check_branch
              %684 = sbr.rel (0) target = $region88
            $region87: #{_lambda_.5} parent=79 // pred_region
              %s686 = ssub.s32 16, 1
              %s687 = sshrl.u32 %s673, 1
              // While loop
              $region89: #{_lambda_.5} parent=87 // loop_pre_header
                _
              $region90: #{_lambda_.5} parent=87 // loop_header
                %s689 = sphi 0, %s691
                %p690 = scmp.ge.s32.totalorder %s689, %s687
                %s694 = sphi 0, %s703
                %s695 = sphi %s666, %s706
                %s696 = sphi %s677, %s707
              $region91: #{_lambda_.5} parent=87 // loop_header_branch
                %693 = sbr.rel (%p690) target = $region95
              $region92: #{_lambda_.5} parent=87 // loop_body
                %v697 = vld [vmem:[%s695] sm:%s686]
                %698 = vst [vmem:[%s696] sm:%s686] %v697
                %v699 = vld [vmem:[%s695 + $0x4] sm:%s686]
                %700 = vst [vmem:[%s696 + $0x4] sm:%s686] %v699
                %s701 = sadd.s32 1, %s694
                %p702 = scmp.ge.s32.totalorder %s701, %s687
                %s703 = scalar_select %p702, 0, %s701
                %s704 = smul.u32 %s703, 8
                %s705 = smul.u32 %s703, 8
                %s706 = scalar_lea.vmem %s666, %s704 [#allocation3]
                %s707 = scalar_lea.vmem %s677, %s705
              $region93: #{_lambda_.5} parent=87 // loop_footer
                %s691 = sadd.s32 %s689, 1
              $region94: #{_lambda_.5} parent=87 // loop_footer_branch
                %688 = sbr.rel target = $region90
              $region95: #{_lambda_.5} parent=87 // loop_exit
                _
              %s708 = sshrl.u32 %s673, 1
              %s709 = sand.u32 %s673, 1
              %s710 = smul.u32 %s708, 2
              %s711 = smul.u32 4, %s710
              %s712 = scalar_lea.vmem %s666, %s711 [#allocation3]
              %s713 = smul.u32 4, %s710
              %s714 = scalar_lea.vmem %s677, %s713
              // While loop
              $region96: #{_lambda_.5} parent=87 // loop_pre_header
                _
              $region97: #{_lambda_.5} parent=87 // loop_header
                %s716 = sphi 0, %s718
                %p717 = scmp.ge.s32.totalorder %s716, %s709
                %s721 = sphi 0, %s728
                %s722 = sphi %s712, %s731
                %s723 = sphi %s714, %s732
              $region98: #{_lambda_.5} parent=87 // loop_header_branch
                %720 = sbr.rel (%p717) target = $region102
              $region99: #{_lambda_.5} parent=87 // loop_body
                %v724 = vld [vmem:[%s722] sm:%s686]
                %725 = vst [vmem:[%s723] sm:%s686] %v724
                %s726 = sadd.s32 1, %s721
                %p727 = scmp.ge.s32.totalorder %s726, %s709
                %s728 = scalar_select %p727, 0, %s726
                %s729 = smul.u32 %s728, 4
                %s730 = smul.u32 %s728, 4
                %s731 = scalar_lea.vmem %s712, %s729 [#allocation3]
                %s732 = scalar_lea.vmem %s714, %s730
              $region100: #{_lambda_.5} parent=87 // loop_footer
                %s718 = sadd.s32 %s716, 1
              $region101: #{_lambda_.5} parent=87 // loop_footer_branch
                %715 = sbr.rel target = $region97
              $region102: #{_lambda_.5} parent=87 // loop_exit
                _
            $region88: #{_lambda_.5} parent=79 // pred_fallthru
              _
          $region80: #{_lambda_.5} parent=75 // pred_fallthru
            _
          %783 = vnop
        $region76: #{_lambda_.5} parent=67 // pred_fallthru
          _
      $region68: #{_lambda_.5} parent=5 // pred_fallthru
        _
      %p784 = scmp.le.s32.totalorder 2, %s9
      // Predicated region
      $region121: #{_lambda_.5} parent=5 // pred_check
        %p785 = pneg %p784
      $region122: #{_lambda_.5} parent=5 // pred_check_branch
        %787 = sbr.rel (%p785) target = $region124
      $region123: #{_lambda_.5} parent=5 // pred_region
        %s788 = ssub.s32 %s9, 2
        // Predicated region
        $region125: #{_lambda_.5} parent=123 // pred_check
          %p789 = pneg %p106
        $region126: #{_lambda_.5} parent=123 // pred_check_branch
          %791 = sbr.rel (%p789) target = $region128
        $region127: #{_lambda_.5} parent=123 // pred_region
          %s792 = sand.u32 %s91, 1
          %s793 = sand.u32 %s91, 1
          %s794 = smul.addr %s793, 8
          %s795 = scalar_lea.vmem [#allocation3], %s794
        $region128: #{_lambda_.5} parent=123 // pred_fallthru
          _
      $region124: #{_lambda_.5} parent=5 // pred_fallthru
        _
    $region6: #{_lambda_.5} parent=1 // loop_footer
      %s13 = sadd.s32 1, %s9
    $region7: #{_lambda_.5} parent=1 // loop_footer_branch
      %8 = sbr.rel target = $region3
    $region8: #{_lambda_.5} parent=1 // loop_exit
      _

// kernel: _lambda_.7
$region0: #{_lambda_.7}
  #allocation0 [shape = 'u32[]', space=smem, size = 0x4, offset = 0x4, fixed_abs, tag = 'smem constant byte address 0x4 - core index']
  #allocation1 [shape = 'u32[72,128]{1,0:T(1,128)}', space=vmem, size = 0x9000, scoped, tag = 'internal scratch']
  %s0 = inlined_call_operand.vmem [shape: bf16[2,128], index: 0, kind: input, shape index: {}]
  %s1 = inlined_call_operand.vmem [shape: bf16[128,512], index: 1, kind: input, shape index: {}]
  %s2 = inlined_call_operand.vmem [shape: f32[1,512], index: 2, kind: input, shape index: {}]
  %s3 = inlined_call_operand.hbm [shape: f32[2,512], index: 3, kind: output, shape index: {}]
  %s4 = sld [smem:[#allocation0]]
  $region22: #{_lambda_.7} parent=0
    _
  %s6 = ssub.s32 1, %s4
  %s7 = scalar_select 0, %s6, %s4
  $region1: #{_lambda_.7} parent=0
    #allocation2 [shape = 'u8[4096]{0}', space=vmem, size = 0x1000, scoped, tag = 'output window, operand 0, single buffered']
    #allocation3 [shape = 's32[1]{0}', space=sflag, size = 0x4, scoped, tag = 'scoped memory for _lambda_.7']
    %8 = vsyncpa [#allocation3], 0
    // Predicated region
    $region2: #{_lambda_.7} parent=1 // pred_check
      _
    $region3: #{_lambda_.7} parent=1 // pred_check_branch
      %10 = sbr.rel (0) target = $region5
    $region4: #{_lambda_.7} parent=1 // pred_region
      _
    $region5: #{_lambda_.7} parent=1 // pred_fallthru
      _
    // Predicated region
    $region6: #{_lambda_.7} parent=1 // pred_check
      _
    $region7: #{_lambda_.7} parent=1 // pred_check_branch
      %12 = sbr.rel (0) target = $region9
    $region8: #{_lambda_.7} parent=1 // pred_region
      _
    $region9: #{_lambda_.7} parent=1 // pred_fallthru
      _
    // Predicated region
    $region10: #{_lambda_.7} parent=1 // pred_check
      _
    $region11: #{_lambda_.7} parent=1 // pred_check_branch
      %14 = sbr.rel (0) target = $region13
    $region12: #{_lambda_.7} parent=1 // pred_region
      _
    $region13: #{_lambda_.7} parent=1 // pred_fallthru
      _
    %v15 = vld [vmem:[%s0] sm:$0x1]
    %v16 = vld [vmem:[%s1] sm:$0xff]
    %v17 = vld [vmem:[%s1 + $0x8] sm:$0xff]
    %v18 = vld [vmem:[%s1 + $0x10] sm:$0xff]
    %v19 = vld [vmem:[%s1 + $0x18] sm:$0xff]
    %v20 = vld [vmem:[%s1 + $0x20] sm:$0xff]
    %v21 = vld [vmem:[%s1 + $0x28] sm:$0xff]
    %v22 = vld [vmem:[%s1 + $0x30] sm:$0xff]
    %v23 = vld [vmem:[%s1 + $0x38] sm:$0xff]
    %v24 = vld [vmem:[%s1 + $0x40] sm:$0xff]
    %v25 = vld [vmem:[%s1 + $0x48] sm:$0xff]
    %v26 = vld [vmem:[%s1 + $0x50] sm:$0xff]
    %v27 = vld [vmem:[%s1 + $0x58] sm:$0xff]
    %v28 = vld [vmem:[%s1 + $0x60] sm:$0xff]
    %v29 = vld [vmem:[%s1 + $0x68] sm:$0xff]
    %v30 = vld [vmem:[%s1 + $0x70] sm:$0xff]
    %v31 = vld [vmem:[%s1 + $0x78] sm:$0xff]
    %v32 = vld [vmem:[%s1 + $0x80] sm:$0xff]
    %v33 = vld [vmem:[%s1 + $0x88] sm:$0xff]
    %v34 = vld [vmem:[%s1 + $0x90] sm:$0xff]
    %v35 = vld [vmem:[%s1 + $0x98] sm:$0xff]
    %v36 = vld [vmem:[%s1 + $0xa0] sm:$0xff]
    %v37 = vld [vmem:[%s1 + $0xa8] sm:$0xff]
    %v38 = vld [vmem:[%s1 + $0xb0] sm:$0xff]
    %v39 = vld [vmem:[%s1 + $0xb8] sm:$0xff]
    %v40 = vld [vmem:[%s1 + $0xc0] sm:$0xff]
    %v41 = vld [vmem:[%s1 + $0xc8] sm:$0xff]
    %v42 = vld [vmem:[%s1 + $0xd0] sm:$0xff]
    %v43 = vld [vmem:[%s1 + $0xd8] sm:$0xff]
    %v44 = vld [vmem:[%s1 + $0xe0] sm:$0xff]
    %v45 = vld [vmem:[%s1 + $0xe8] sm:$0xff]
    %v46 = vld [vmem:[%s1 + $0xf0] sm:$0xff]
    %v47 = vld [vmem:[%s1 + $0xf8] sm:$0xff]
    %v48 = vld [vmem:[%s2] sm:$0xf]
    %v50 = vperm.slane %v48, 0
    %v51 = vperm.slane %v48, 1
    %v52 = vperm.slane %v48, 2
    %v53 = vperm.slane %v48, 3
    %v90 = vunpack.c.l.b16 %v16
    %v91 = vunpack.c.h.b16 %v16
    %v92 = vunpack.c.l.b16 %v17
    %v93 = vunpack.c.h.b16 %v17
    %v94 = vunpack.c.l.b16 %v18
    %v95 = vunpack.c.h.b16 %v18
    %v96 = vunpack.c.l.b16 %v19
    %v97 = vunpack.c.h.b16 %v19
    %v98 = vunpack.c.l.b16 %v20
    %v99 = vunpack.c.h.b16 %v20
    %v100 = vunpack.c.l.b16 %v21
    %v101 = vunpack.c.h.b16 %v21
    %v102 = vunpack.c.l.b16 %v22
    %v103 = vunpack.c.h.b16 %v22
    %v104 = vunpack.c.l.b16 %v23
    %v105 = vunpack.c.h.b16 %v23
    %v106 = vunpack.c.l.b16 %v24
    %v107 = vunpack.c.h.b16 %v24
    %v108 = vunpack.c.l.b16 %v25
    %v109 = vunpack.c.h.b16 %v25
    %v110 = vunpack.c.l.b16 %v26
    %v111 = vunpack.c.h.b16 %v26
    %v112 = vunpack.c.l.b16 %v27
    %v113 = vunpack.c.h.b16 %v27
    %v114 = vunpack.c.l.b16 %v28
    %v115 = vunpack.c.h.b16 %v28
    %v116 = vunpack.c.l.b16 %v29
    %v117 = vunpack.c.h.b16 %v29
    %v118 = vunpack.c.l.b16 %v30
    %v119 = vunpack.c.h.b16 %v30
    %v120 = vunpack.c.l.b16 %v31
    %v121 = vunpack.c.h.b16 %v31
    %v122 = vunpack.c.l.b16 %v32
    %v123 = vunpack.c.h.b16 %v32
    %v124 = vunpack.c.l.b16 %v33
    %v125 = vunpack.c.h.b16 %v33
    %v126 = vunpack.c.l.b16 %v34
    %v127 = vunpack.c.h.b16 %v34
    %v128 = vunpack.c.l.b16 %v35
    %v129 = vunpack.c.h.b16 %v35
    %v130 = vunpack.c.l.b16 %v36
    %v131 = vunpack.c.h.b16 %v36
    %v132 = vunpack.c.l.b16 %v37
    %v133 = vunpack.c.h.b16 %v37
    %v134 = vunpack.c.l.b16 %v38
    %v135 = vunpack.c.h.b16 %v38
    %v136 = vunpack.c.l.b16 %v39
    %v137 = vunpack.c.h.b16 %v39
    %v138 = vunpack.c.l.b16 %v40
    %v139 = vunpack.c.h.b16 %v40
    %v140 = vunpack.c.l.b16 %v41
    %v141 = vunpack.c.h.b16 %v41
    %v142 = vunpack.c.l.b16 %v42
    %v143 = vunpack.c.h.b16 %v42
    %v144 = vunpack.c.l.b16 %v43
    %v145 = vunpack.c.h.b16 %v43
    %v146 = vunpack.c.l.b16 %v44
    %v147 = vunpack.c.h.b16 %v44
    %v148 = vunpack.c.l.b16 %v45
    %v149 = vunpack.c.h.b16 %v45
    %v150 = vunpack.c.l.b16 %v46
    %v151 = vunpack.c.h.b16 %v46
    %v152 = vunpack.c.l.b16 %v47
    %v153 = vunpack.c.h.b16 %v47
    %v154 = vpack.c.b16 %v94, %v90
    %v155 = vpack.c.b16 %v95, %v91
    %v156 = vpack.c.b16 %v96, %v92
    %v157 = vpack.c.b16 %v97, %v93
    %v158 = vpack.c.b16 %v102, %v98
    %v159 = vpack.c.b16 %v103, %v99
    %v160 = vpack.c.b16 %v104, %v100
    %v161 = vpack.c.b16 %v105, %v101
    %v162 = vpack.c.b16 %v110, %v106
    %v163 = vpack.c.b16 %v111, %v107
    %v164 = vpack.c.b16 %v112, %v108
    %v165 = vpack.c.b16 %v113, %v109
    %v166 = vpack.c.b16 %v118, %v114
    %v167 = vpack.c.b16 %v119, %v115
    %v168 = vpack.c.b16 %v120, %v116
    %v169 = vpack.c.b16 %v121, %v117
    %v170 = vpack.c.b16 %v126, %v122
    %v171 = vpack.c.b16 %v127, %v123
    %v172 = vpack.c.b16 %v128, %v124
    %v173 = vpack.c.b16 %v129, %v125
    %v174 = vpack.c.b16 %v134, %v130
    %v175 = vpack.c.b16 %v135, %v131
    %v176 = vpack.c.b16 %v136, %v132
    %v177 = vpack.c.b16 %v137, %v133
    %v178 = vpack.c.b16 %v142, %v138
    %v179 = vpack.c.b16 %v143, %v139
    %v180 = vpack.c.b16 %v144, %v140
    %v181 = vpack.c.b16 %v145, %v141
    %v182 = vpack.c.b16 %v150, %v146
    %v183 = vpack.c.b16 %v151, %v147
    %v184 = vpack.c.b16 %v152, %v148
    %v185 = vpack.c.b16 %v153, %v149
    %218 = vmatpush.bf16.msra.mxu0 %v182
    %219 = vmatpush.bf16.msra.mxu0 %v178
    %220 = vmatpush.bf16.msra.mxu0 %v174
    %221 = vmatpush.bf16.msra.mxu0 %v170
    %222 = vmatpush.bf16.msra.mxu0 %v166
    %223 = vmatpush.bf16.msra.mxu0 %v162
    %224 = vmatpush.bf16.msra.mxu0 %v158
    %225 = vmatpush.bf16.msra.mxu0 %v154
    %226 = vmatmul.bf16.gmra.mxu0 %v15
    %v227 = vpop.f32.mrf.mxu0
    %v228 = vadd.f32 %v50, %v227
    %v229 = vpop.f32.mrf.mxu0
    %230 = vdwg.mxu0
    %231 = vmatpush.bf16.msra.mxu0 %v183
    %232 = vmatpush.bf16.msra.mxu0 %v179
    %233 = vmatpush.bf16.msra.mxu0 %v175
    %234 = vmatpush.bf16.msra.mxu0 %v171
    %235 = vmatpush.bf16.msra.mxu0 %v167
    %236 = vmatpush.bf16.msra.mxu0 %v163
    %237 = vmatpush.bf16.msra.mxu0 %v159
    %238 = vmatpush.bf16.msra.mxu0 %v155
    %239 = vmatmul.bf16.gmra.mxu0 %v15
    %v240 = vpop.f32.mrf.mxu0
    %v241 = vadd.f32 %v51, %v240
    %v242 = vpop.f32.mrf.mxu0
    %243 = vdwg.mxu0
    %244 = vmatpush.bf16.msra.mxu0 %v184
    %245 = vmatpush.bf16.msra.mxu0 %v180
    %246 = vmatpush.bf16.msra.mxu0 %v176
    %247 = vmatpush.bf16.msra.mxu0 %v172
    %248 = vmatpush.bf16.msra.mxu0 %v168
    %249 = vmatpush.bf16.msra.mxu0 %v164
    %250 = vmatpush.bf16.msra.mxu0 %v160
    %251 = vmatpush.bf16.msra.mxu0 %v156
    %252 = vmatmul.bf16.gmra.mxu0 %v15
    %v253 = vpop.f32.mrf.mxu0
    %v254 = vadd.f32 %v52, %v253
    %v255 = vpop.f32.mrf.mxu0
    %256 = vdwg.mxu0
    %257 = vmatpush.bf16.msra.mxu0 %v185
    %258 = vmatpush.bf16.msra.mxu0 %v181
    %259 = vmatpush.bf16.msra.mxu0 %v177
    %260 = vmatpush.bf16.msra.mxu0 %v173
    %261 = vmatpush.bf16.msra.mxu0 %v169
    %262 = vmatpush.bf16.msra.mxu0 %v165
    %263 = vmatpush.bf16.msra.mxu0 %v161
    %264 = vmatpush.bf16.msra.mxu0 %v157
    %265 = vmatmul.bf16.gmra.mxu0 %v15
    %v266 = vpop.f32.mrf.mxu0
    %v267 = vadd.f32 %v53, %v266
    %v268 = vpop.f32.mrf.mxu0
    %269 = vdwg.mxu0
    %v274 = vrot.slane %v241, 6
    %v275 = vrot.slane %v254, 4
    %v276 = vrot.slane %v267, 2
    %vm277 = vcmask 1041408
    %v278 = vsel %vm277, %v228, %v274
    %vm279 = vcmask 1045508
    %v280 = vsel %vm279, %v275, %v276
    %vm281 = vcmask 1043456
    %v282 = vsel %vm281, %v278, %v280
    %284 = vst [vmem:[#allocation2] sm:$0xff] %v282
    // Predicated region
    $region14: #{_lambda_.7} parent=1 // pred_check
      _
    $region15: #{_lambda_.7} parent=1 // pred_check_branch
      %286 = sbr.rel (0) target = $region17
    $region16: #{_lambda_.7} parent=1 // pred_region
      %288 = vsyncadd [#allocation3], 0
      %s290 = sshll.u32 [#allocation2], 4
      %s291 = int_to_ptr.vmem [resolvable:$true] %s290
      %s292 = sshll.u32 %s3, 4
      %s293 = int_to_ptr.hbm [resolvable:$true] %s292
      %295 = dma.vmem_to_hbm [thread:$0]  %s291, 128, %s293, [#allocation3]
    $region17: #{_lambda_.7} parent=1 // pred_fallthru
      _
    // Predicated region
    $region18: #{_lambda_.7} parent=1 // pred_check
      _
    $region19: #{_lambda_.7} parent=1 // pred_check_branch
      %297 = sbr.rel (0) target = $region21
    $region20: #{_lambda_.7} parent=1 // pred_region
      %299 = dma.done [#allocation3], 128
    $region21: #{_lambda_.7} parent=1 // pred_fallthru
      _
    %300 = vsyncpa [#allocation3], 1

// kernel: _lambda_.6
$region0: #{_lambda_.6}
  #allocation0 [shape = 'u32[]', space=smem, size = 0x4, offset = 0x4, fixed_abs, tag = 'smem constant byte address 0x4 - core index']
  #allocation1 [shape = 'u32[72,128]{1,0:T(1,128)}', space=vmem, size = 0x9000, scoped, tag = 'internal scratch']
  %s0 = inlined_call_operand.vmem [shape: bf16[4,8,576], index: 0, kind: input, shape index: {}]
  %s1 = inlined_call_operand.vmem [shape: bf16[576,128], index: 1, kind: input, shape index: {}]
  %s2 = inlined_call_operand.vmem [shape: f32[1,128], index: 2, kind: input, shape index: {}]
  %s3 = inlined_call_operand.vmem [shape: bf16[8,128], index: 3, kind: output, shape index: {}]
  %s4 = sld [smem:[#allocation0]]
  $region22: #{_lambda_.6} parent=0
    _
  %s6 = ssub.s32 1, %s4
  %s7 = scalar_select 0, %s6, %s4
  // Predicated region
  $region2: #{_lambda_.6} parent=0 // pred_check
    _
  $region3: #{_lambda_.6} parent=0 // pred_check_branch
    %9 = sbr.rel (0) target = $region5
  $region4: #{_lambda_.6} parent=0 // pred_region
    _
  $region5: #{_lambda_.6} parent=0 // pred_fallthru
    _
  // Predicated region
  $region6: #{_lambda_.6} parent=0 // pred_check
    _
  $region7: #{_lambda_.6} parent=0 // pred_check_branch
    %11 = sbr.rel (0) target = $region9
  $region8: #{_lambda_.6} parent=0 // pred_region
    _
  $region9: #{_lambda_.6} parent=0 // pred_fallthru
    _
  // Predicated region
  $region10: #{_lambda_.6} parent=0 // pred_check
    _
  $region11: #{_lambda_.6} parent=0 // pred_check_branch
    %13 = sbr.rel (0) target = $region13
  $region12: #{_lambda_.6} parent=0 // pred_region
    _
  $region13: #{_lambda_.6} parent=0 // pred_fallthru
    _
  %v15 = vld [vmem:[%s0] sm:$0xff]
  %v16 = vld [vmem:[%s0 + $0x8] sm:$0xff]
  %v17 = vld [vmem:[%s0 + $0x10] sm:$0xf]
  %v18 = vld [vmem:[%s0 + $0x14] sm:$0xff]
  %v19 = vld [vmem:[%s0 + $0x1c] sm:$0xff]
  %v20 = vld [vmem:[%s0 + $0x24] sm:$0xf]
  %v21 = vld [vmem:[%s0 + $0x28] sm:$0xff]
  %v22 = vld [vmem:[%s0 + $0x30] sm:$0xff]
  %v23 = vld [vmem:[%s0 + $0x38] sm:$0xf]
  %v24 = vld [vmem:[%s0 + $0x3c] sm:$0xff]
  %v25 = vld [vmem:[%s0 + $0x44] sm:$0xff]
  %v26 = vld [vmem:[%s0 + $0x4c] sm:$0xf]
  %v27 = vld [vmem:[%s1] sm:$0xf]
  %v28 = vld [vmem:[%s1 + $0x4] sm:$0xf]
  %v29 = vld [vmem:[%s1 + $0x8] sm:$0xf]
  %v30 = vld [vmem:[%s1 + $0xc] sm:$0xf]
  %v31 = vld [vmem:[%s1 + $0x10] sm:$0xf]
  %v32 = vld [vmem:[%s1 + $0x14] sm:$0xf]
  %v33 = vld [vmem:[%s1 + $0x18] sm:$0xf]
  %v34 = vld [vmem:[%s1 + $0x1c] sm:$0xf]
  %v35 = vld [vmem:[%s1 + $0x20] sm:$0xf]
  %v36 = vld [vmem:[%s1 + $0x24] sm:$0xf]
  %v37 = vld [vmem:[%s1 + $0x28] sm:$0xf]
  %v38 = vld [vmem:[%s1 + $0x2c] sm:$0xf]
  %v39 = vld [vmem:[%s1 + $0x30] sm:$0xf]
  %v40 = vld [vmem:[%s1 + $0x34] sm:$0xf]
  %v41 = vld [vmem:[%s1 + $0x38] sm:$0xf]
  %v42 = vld [vmem:[%s1 + $0x3c] sm:$0xf]
  %v43 = vld [vmem:[%s1 + $0x40] sm:$0xf]
  %v44 = vld [vmem:[%s1 + $0x44] sm:$0xf]
  %v45 = vld [vmem:[%s1 + $0x48] sm:$0xf]
  %v46 = vld [vmem:[%s1 + $0x4c] sm:$0xf]
  %v47 = vld [vmem:[%s1 + $0x50] sm:$0xf]
  %v48 = vld [vmem:[%s1 + $0x54] sm:$0xf]
  %v49 = vld [vmem:[%s1 + $0x58] sm:$0xf]
  %v50 = vld [vmem:[%s1 + $0x5c] sm:$0xf]
  %v51 = vld [vmem:[%s1 + $0x60] sm:$0xf]
  %v52 = vld [vmem:[%s1 + $0x64] sm:$0xf]
  %v53 = vld [vmem:[%s1 + $0x68] sm:$0xf]
  %v54 = vld [vmem:[%s1 + $0x6c] sm:$0xf]
  %v55 = vld [vmem:[%s1 + $0x70] sm:$0xf]
  %v56 = vld [vmem:[%s1 + $0x74] sm:$0xf]
  %v57 = vld [vmem:[%s1 + $0x78] sm:$0xf]
  %v58 = vld [vmem:[%s1 + $0x7c] sm:$0xf]
  %v59 = vld [vmem:[%s1 + $0x80] sm:$0xf]
  %v60 = vld [vmem:[%s1 + $0x84] sm:$0xf]
  %v61 = vld [vmem:[%s1 + $0x88] sm:$0xf]
  %v62 = vld [vmem:[%s1 + $0x8c] sm:$0xf]
  %v63 = vld [vmem:[%s1 + $0x90] sm:$0xf]
  %v64 = vld [vmem:[%s1 + $0x94] sm:$0xf]
  %v65 = vld [vmem:[%s1 + $0x98] sm:$0xf]
  %v66 = vld [vmem:[%s1 + $0x9c] sm:$0xf]
  %v67 = vld [vmem:[%s1 + $0xa0] sm:$0xf]
  %v68 = vld [vmem:[%s1 + $0xa4] sm:$0xf]
  %v69 = vld [vmem:[%s1 + $0xa8] sm:$0xf]
  %v70 = vld [vmem:[%s1 + $0xac] sm:$0xf]
  %v71 = vld [vmem:[%s1 + $0xb0] sm:$0xf]
  %v72 = vld [vmem:[%s1 + $0xb4] sm:$0xf]
  %v73 = vld [vmem:[%s1 + $0xb8] sm:$0xf]
  %v74 = vld [vmem:[%s1 + $0xbc] sm:$0xf]
  %v75 = vld [vmem:[%s1 + $0xc0] sm:$0xf]
  %v76 = vld [vmem:[%s1 + $0xc4] sm:$0xf]
  %v77 = vld [vmem:[%s1 + $0xc8] sm:$0xf]
  %v78 = vld [vmem:[%s1 + $0xcc] sm:$0xf]
  %v79 = vld [vmem:[%s1 + $0xd0] sm:$0xf]
  %v80 = vld [vmem:[%s1 + $0xd4] sm:$0xf]
  %v81 = vld [vmem:[%s1 + $0xd8] sm:$0xf]
  %v82 = vld [vmem:[%s1 + $0xdc] sm:$0xf]
  %v83 = vld [vmem:[%s1 + $0xe0] sm:$0xf]
  %v84 = vld [vmem:[%s1 + $0xe4] sm:$0xf]
  %v85 = vld [vmem:[%s1 + $0xe8] sm:$0xf]
  %v86 = vld [vmem:[%s1 + $0xec] sm:$0xf]
  %v87 = vld [vmem:[%s1 + $0xf0] sm:$0xf]
  %v88 = vld [vmem:[%s1 + $0xf4] sm:$0xf]
  %v89 = vld [vmem:[%s1 + $0xf8] sm:$0xf]
  %v90 = vld [vmem:[%s1 + $0xfc] sm:$0xf]
  %v91 = vld [vmem:[%s1 + $0x100] sm:$0xf]
  %v92 = vld [vmem:[%s1 + $0x104] sm:$0xf]
  %v93 = vld [vmem:[%s1 + $0x108] sm:$0xf]
  %v94 = vld [vmem:[%s1 + $0x10c] sm:$0xf]
  %v95 = vld [vmem:[%s1 + $0x110] sm:$0xf]
  %v96 = vld [vmem:[%s1 + $0x114] sm:$0xf]
  %v97 = vld [vmem:[%s1 + $0x118] sm:$0xf]
  %v98 = vld [vmem:[%s1 + $0x11c] sm:$0xf]
  %v111 = vunpack.c.l.b16 %v15
  %v112 = vunpack.c.h.b16 %v15
  %v113 = vunpack.c.l.b16 %v16
  %v114 = vunpack.c.h.b16 %v16
  %v115 = vunpack.c.l.b16 %v17
  %v116 = vunpack.c.l.b16 %v18
  %v117 = vunpack.c.h.b16 %v18
  %v118 = vunpack.c.l.b16 %v19
  %v119 = vunpack.c.h.b16 %v19
  %v120 = vunpack.c.l.b16 %v20
  %v121 = vunpack.c.l.b16 %v21
  %v122 = vunpack.c.h.b16 %v21
  %v123 = vunpack.c.l.b16 %v22
  %v124 = vunpack.c.h.b16 %v22
  %v125 = vunpack.c.l.b16 %v23
  %v126 = vunpack.c.l.b16 %v24
  %v127 = vunpack.c.h.b16 %v24
  %v128 = vunpack.c.l.b16 %v25
  %v129 = vunpack.c.h.b16 %v25
  %v130 = vunpack.c.l.b16 %v26
  %v131 = vpack.c.b16 %v116, %v111
  %v132 = vpack.c.b16 %v117, %v112
  %v133 = vpack.c.b16 %v118, %v113
  %v134 = vpack.c.b16 %v119, %v114
  %v135 = vpack.c.b16 %v120, %v115
  %v136 = vpack.c.b16 %v126, %v121
  %v137 = vpack.c.b16 %v127, %v122
  %v138 = vpack.c.b16 %v128, %v123
  %v139 = vpack.c.b16 %v129, %v124
  %v140 = vpack.c.b16 %v130, %v125
  %v221 = vunpack.c.l.b16 %v27
  %v222 = vunpack.c.l.b16 %v28
  %v223 = vunpack.c.l.b16 %v29
  %v224 = vunpack.c.l.b16 %v30
  %v225 = vunpack.c.l.b16 %v31
  %v226 = vunpack.c.l.b16 %v32
  %v227 = vunpack.c.l.b16 %v33
  %v228 = vunpack.c.l.b16 %v34
  %v229 = vunpack.c.l.b16 %v35
  %v230 = vunpack.c.l.b16 %v36
  %v231 = vunpack.c.l.b16 %v37
  %v232 = vunpack.c.l.b16 %v38
  %v233 = vunpack.c.l.b16 %v39
  %v234 = vunpack.c.l.b16 %v40
  %v235 = vunpack.c.l.b16 %v41
  %v236 = vunpack.c.l.b16 %v42
  %v237 = vunpack.c.l.b16 %v43
  %v238 = vunpack.c.l.b16 %v44
  %v239 = vunpack.c.l.b16 %v45
  %v240 = vunpack.c.l.b16 %v46
  %v241 = vunpack.c.l.b16 %v47
  %v242 = vunpack.c.l.b16 %v48
  %v243 = vunpack.c.l.b16 %v49
  %v244 = vunpack.c.l.b16 %v50
  %v245 = vunpack.c.l.b16 %v51
  %v246 = vunpack.c.l.b16 %v52
  %v247 = vunpack.c.l.b16 %v53
  %v248 = vunpack.c.l.b16 %v54
  %v249 = vunpack.c.l.b16 %v55
  %v250 = vunpack.c.l.b16 %v56
  %v251 = vunpack.c.l.b16 %v57
  %v252 = vunpack.c.l.b16 %v58
  %v253 = vunpack.c.l.b16 %v59
  %v254 = vunpack.c.l.b16 %v60
  %v255 = vunpack.c.l.b16 %v61
  %v256 = vunpack.c.l.b16 %v62
  %v257 = vunpack.c.l.b16 %v63
  %v258 = vunpack.c.l.b16 %v64
  %v259 = vunpack.c.l.b16 %v65
  %v260 = vunpack.c.l.b16 %v66
  %v261 = vunpack.c.l.b16 %v67
  %v262 = vunpack.c.l.b16 %v68
  %v263 = vunpack.c.l.b16 %v69
  %v264 = vunpack.c.l.b16 %v70
  %v265 = vunpack.c.l.b16 %v71
  %v266 = vunpack.c.l.b16 %v72
  %v267 = vunpack.c.l.b16 %v73
  %v268 = vunpack.c.l.b16 %v74
  %v269 = vunpack.c.l.b16 %v75
  %v270 = vunpack.c.l.b16 %v76
  %v271 = vunpack.c.l.b16 %v77
  %v272 = vunpack.c.l.b16 %v78
  %v273 = vunpack.c.l.b16 %v79
  %v274 = vunpack.c.l.b16 %v80
  %v275 = vunpack.c.l.b16 %v81
  %v276 = vunpack.c.l.b16 %v82
  %v277 = vunpack.c.l.b16 %v83
  %v278 = vunpack.c.l.b16 %v84
  %v279 = vunpack.c.l.b16 %v85
  %v280 = vunpack.c.l.b16 %v86
  %v281 = vunpack.c.l.b16 %v87
  %v282 = vunpack.c.l.b16 %v88
  %v283 = vunpack.c.l.b16 %v89
  %v284 = vunpack.c.l.b16 %v90
  %v285 = vunpack.c.l.b16 %v91
  %v286 = vunpack.c.l.b16 %v92
  %v287 = vunpack.c.l.b16 %v93
  %v288 = vunpack.c.l.b16 %v94
  %v289 = vunpack.c.l.b16 %v95
  %v290 = vunpack.c.l.b16 %v96
  %v291 = vunpack.c.l.b16 %v97
  %v292 = vunpack.c.l.b16 %v98
  %v293 = vpack.c.b16 %v222, %v221
  %v294 = vpack.c.b16 %v224, %v223
  %v295 = vpack.c.b16 %v226, %v225
  %v296 = vpack.c.b16 %v228, %v227
  %v297 = vpack.c.b16 %v230, %v229
  %v298 = vpack.c.b16 %v232, %v231
  %v299 = vpack.c.b16 %v234, %v233
  %v300 = vpack.c.b16 %v236, %v235
  %v301 = vpack.c.b16 %v238, %v237
  %v302 = vpack.c.b16 %v240, %v239
  %v303 = vpack.c.b16 %v242, %v241
  %v304 = vpack.c.b16 %v244, %v243
  %v305 = vpack.c.b16 %v246, %v245
  %v306 = vpack.c.b16 %v248, %v247
  %v307 = vpack.c.b16 %v250, %v249
  %v308 = vpack.c.b16 %v252, %v251
  %v309 = vpack.c.b16 %v254, %v253
  %v310 = vpack.c.b16 %v256, %v255
  %v311 = vpack.c.b16 %v258, %v257
  %v312 = vpack.c.b16 %v260, %v259
  %v313 = vpack.c.b16 %v262, %v261
  %v314 = vpack.c.b16 %v264, %v263
  %v315 = vpack.c.b16 %v266, %v265
  %v316 = vpack.c.b16 %v268, %v267
  %v317 = vpack.c.b16 %v270, %v269
  %v318 = vpack.c.b16 %v272, %v271
  %v319 = vpack.c.b16 %v274, %v273
  %v320 = vpack.c.b16 %v276, %v275
  %v321 = vpack.c.b16 %v278, %v277
  %v322 = vpack.c.b16 %v280, %v279
  %v323 = vpack.c.b16 %v282, %v281
  %v324 = vpack.c.b16 %v284, %v283
  %v325 = vpack.c.b16 %v286, %v285
  %v326 = vpack.c.b16 %v288, %v287
  %v327 = vpack.c.b16 %v290, %v289
  %v328 = vpack.c.b16 %v292, %v291
  %vm365 = vcmask 523264
  %v367 = vsel %vm365, %v135, 0
  %v370 = vsel %vm365, %v140, 0
  %372 = vmatpush.bf16.msra.mxu0 %v300
  %373 = vmatpush.bf16.msra.mxu0 %v299
  %374 = vmatpush.bf16.msra.mxu0 %v298
  %375 = vmatpush.bf16.msra.mxu0 %v297
  %376 = vmatpush.bf16.msra.mxu0 %v296
  %377 = vmatpush.bf16.msra.mxu0 %v295
  %378 = vmatpush.bf16.msra.mxu0 %v294
  %379 = vmatpush.bf16.msra.mxu0 %v293
  %380 = vmatmul.bf16.gmra.mxu0 %v131
  %v381 = vpop.f32.mrf.mxu0
  %v382 = vadd.f32 0.0, %v381
  %v383 = vpop.f32.mrf.mxu0
  %v384 = vadd.f32 0.0, %v383
  %385 = vmatmul.bf16.gmra.mxu0 %v136
  %v386 = vpop.f32.mrf.mxu0
  %v387 = vadd.f32 0.0, %v386
  %v388 = vpop.f32.mrf.mxu0
  %v389 = vadd.f32 0.0, %v388
  %390 = vdwg.mxu0
  %391 = vmatpush.bf16.msra.mxu0 %v308
  %392 = vmatpush.bf16.msra.mxu0 %v307
  %393 = vmatpush.bf16.msra.mxu0 %v306
  %394 = vmatpush.bf16.msra.mxu0 %v305
  %395 = vmatpush.bf16.msra.mxu0 %v304
  %396 = vmatpush.bf16.msra.mxu0 %v303
  %397 = vmatpush.bf16.msra.mxu0 %v302
  %398 = vmatpush.bf16.msra.mxu0 %v301
  %399 = vmatmul.bf16.gmra.mxu0 %v132
  %v400 = vpop.f32.mrf.mxu0
  %v401 = vadd.f32 %v382, %v400
  %v402 = vpop.f32.mrf.mxu0
  %v403 = vadd.f32 %v384, %v402
  %404 = vmatmul.bf16.gmra.mxu0 %v137
  %v405 = vpop.f32.mrf.mxu0
  %v406 = vadd.f32 %v387, %v405
  %v407 = vpop.f32.mrf.mxu0
  %v408 = vadd.f32 %v389, %v407
  %409 = vdwg.mxu0
  %410 = vmatpush.bf16.msra.mxu0 %v316
  %411 = vmatpush.bf16.msra.mxu0 %v315
  %412 = vmatpush.bf16.msra.mxu0 %v314
  %413 = vmatpush.bf16.msra.mxu0 %v313
  %414 = vmatpush.bf16.msra.mxu0 %v312
  %415 = vmatpush.bf16.msra.mxu0 %v311
  %416 = vmatpush.bf16.msra.mxu0 %v310
  %417 = vmatpush.bf16.msra.mxu0 %v309
  %418 = vmatmul.bf16.gmra.mxu0 %v133
  %v419 = vpop.f32.mrf.mxu0
  %v420 = vadd.f32 %v401, %v419
  %v421 = vpop.f32.mrf.mxu0
  %v422 = vadd.f32 %v403, %v421
  %423 = vmatmul.bf16.gmra.mxu0 %v138
  %v424 = vpop.f32.mrf.mxu0
  %v425 = vadd.f32 %v406, %v424
  %v426 = vpop.f32.mrf.mxu0
  %v427 = vadd.f32 %v408, %v426
  %428 = vdwg.mxu0
  %429 = vmatpush.bf16.msra.mxu0 %v324
  %430 = vmatpush.bf16.msra.mxu0 %v323
  %431 = vmatpush.bf16.msra.mxu0 %v322
  %432 = vmatpush.bf16.msra.mxu0 %v321
  %433 = vmatpush.bf16.msra.mxu0 %v320
  %434 = vmatpush.bf16.msra.mxu0 %v319
  %435 = vmatpush.bf16.msra.mxu0 %v318
  %436 = vmatpush.bf16.msra.mxu0 %v317
  %437 = vmatmul.bf16.gmra.mxu0 %v134
  %v438 = vpop.f32.mrf.mxu0
  %v439 = vadd.f32 %v420, %v438
  %v440 = vpop.f32.mrf.mxu0
  %v441 = vadd.f32 %v422, %v440
  %442 = vmatmul.bf16.gmra.mxu0 %v139
  %v443 = vpop.f32.mrf.mxu0
  %v444 = vadd.f32 %v425, %v443
  %v445 = vpop.f32.mrf.mxu0
  %v446 = vadd.f32 %v427, %v445
  %447 = vdwg.mxu0
  %448 = vmatpush.bf16.msra.mxu0 0
  %449 = vmatpush.bf16.msra.mxu0 0
  %450 = vmatpush.bf16.msra.mxu0 0
  %451 = vmatpush.bf16.msra.mxu0 0
  %452 = vmatpush.bf16.msra.mxu0 %v328
  %453 = vmatpush.bf16.msra.mxu0 %v327
  %454 = vmatpush.bf16.msra.mxu0 %v326
  %455 = vmatpush.bf16.msra.mxu0 %v325
  %456 = vmatmul.bf16.gmra.mxu0 %v367
  %v457 = vpop.f32.mrf.mxu0
  %v458 = vadd.f32 %v439, %v457
  %v459 = vpop.f32.mrf.mxu0
  %v460 = vadd.f32 %v441, %v459
  %461 = vmatmul.bf16.gmra.mxu0 %v370
  %v462 = vpop.f32.mrf.mxu0
  %v463 = vadd.f32 %v444, %v462
  %v464 = vpop.f32.mrf.mxu0
  %v465 = vadd.f32 %v446, %v464
  %466 = vdwg.mxu0
  %v467 = vmax.f32 %v458, %v460
  %v468 = vmax.f32 %v463, %v465
  %v469 = vmax.f32 %v467, %v468
  %v470 = vld [vmem:[%s2] sm:$0x1]
  %v472 = vperm.slane %v470, 0
  %v474 = vadd.f32 %v469, %v472
  %v475 = vmax.f32 %v474, 0.0
  %v476 = vpack.c.bf16 %v475, %v475
  %477 = vst [vmem:[%s3] sm:$0xf] %v476
  // Predicated region
  $region14: #{_lambda_.6} parent=0 // pred_check
    _
  $region15: #{_lambda_.6} parent=0 // pred_check_branch
    %479 = sbr.rel (0) target = $region17
  $region16: #{_lambda_.6} parent=0 // pred_region
    _
  $region17: #{_lambda_.6} parent=0 // pred_fallthru
    _
  // Predicated region
  $region18: #{_lambda_.6} parent=0 // pred_check
    _
  $region19: #{_lambda_.6} parent=0 // pred_check_branch
    %481 = sbr.rel (0) target = $region21
  $region20: #{_lambda_.6} parent=0 // pred_region
    _
  $region21: #{_lambda_.6} parent=0 // pred_fallthru
    _

</llo_original>
